<compile_context>
chip_gen: v7x
topology: tpu7x:2x2x1
jax: 0.10.0
libtpu: 0.0.40
codegen_flags: <defaults>
</compile_context>

<pallas_src>
import functools

import jax
import jax.numpy as jnp
from jax.experimental import pallas as pl
from jax.experimental.pallas import tpu as pltpu


def _round_up(n, m):
    return ((n + m - 1) // m) * m


def mlp_kernel(x_ref, w1_ref, b1_ref, w2_ref, b2_ref, w3_ref, b3_ref, o_ref):
    # layer_1 + ReLU  (bf16 x bf16 -> f32 accumulate on the MXU)
    x = x_ref[...].astype(jnp.bfloat16)
    h = jnp.dot(x, w1_ref[...], preferred_element_type=jnp.float32)
    h = jnp.maximum(h + b1_ref[...], 0.0)
    # layer_2 + ReLU
    h = jnp.dot(h.astype(jnp.bfloat16), w2_ref[...],
                preferred_element_type=jnp.float32)
    h = jnp.maximum(h + b2_ref[...], 0.0)
    # layer_3 (no activation)
    h = jnp.dot(h.astype(jnp.bfloat16), w3_ref[...],
                preferred_element_type=jnp.float32)
    o_ref[...] = (h + b3_ref[...]).astype(o_ref.dtype)


def prepare_params(params):
    """One-time conversion (hoisted out of the per-call path).

    Weights -> bf16 (in_features, out_features); biases -> f32 (1, n).
    """
    return {
        "w1": params["w1"].astype(jnp.bfloat16),
        "w2": params["w2"].astype(jnp.bfloat16),
        "w3": params["w3"].astype(jnp.bfloat16),
        "b1": params["b1"].astype(jnp.float32).reshape(1, -1),
        "b2": params["b2"].astype(jnp.float32).reshape(1, -1),
        "b3": params["b3"].astype(jnp.float32).reshape(1, -1),
    }


def _full_spec(shape, mode=None):
    """Full-array block with a constant index_map (fetched once)."""
    nd = len(shape)
    idx = lambda i, _nd=nd: (0,) * _nd
    if mode is None:
        return pl.BlockSpec(shape, idx)
    return pl.BlockSpec(shape, idx, pipeline_mode=mode)


@functools.partial(jax.jit, static_argnames=("tile_b",))
def neural_net_forward(x, prepared, *, tile_b=512):
    """x: (B, input_size) f32.  prepared: output of prepare_params()."""
    B, in_size = x.shape
    hid = prepared["w1"].shape[1]
    ncls = prepared["w3"].shape[1]

    # Batch tiling: a single fat tile when B <= tile_b, otherwise tile_b-row
    # steps (tb is kept a multiple of 8 for the sublane constraint).
    tile_b = _round_up(tile_b, 8)
    tb = min(_round_up(B, 8), tile_b)
    Bp = _round_up(B, tb)
    if Bp != B:
        x = jnp.pad(x, ((0, Bp - B), (0, 0)))  # rare: only when B % tb != 0
    grid = (Bp // tb,)

    # Constant-index weights do not need double buffering; only override the
    # pipeline mode when their footprint is big enough to matter (keeps the
    # kernel portable to v7x's 64 MiB VMEM as the model scales).
    w_bytes = sum(
        int(prepared[k].size) * prepared[k].dtype.itemsize
        for k in ("w1", "w2", "w3", "b1", "b2", "b3"))
    w_mode = pl.Buffered(1) if 2 * w_bytes > (4 << 20) else None

    # Generation-aware VMEM budget (v7x: 64 MiB physical, v5e/v6e: 128 MiB).
    try:
        vmem_cap = int(getattr(pltpu.get_tpu_info(), "vmem_capacity_bytes",
                               64 << 20))
    except Exception:  # pragma: no cover - defensive fallback
        vmem_cap = 64 << 20
    bf16_act = tb * max(in_size, hid, ncls) * 2
    f32_act = tb * max(hid, ncls) * 4
    footprint = (
        2 * tb * in_size * 4                       # double-buffered x tiles
        + 2 * tb * ncls * 4                        # double-buffered out tiles
        + (1 if w_mode is not None else 2) * w_bytes
        + 2 * (bf16_act + f32_act)                 # in-kernel temporaries
    )
    vmem_limit = int(min(max(4 * footprint, 16 << 20), int(0.75 * vmem_cap)))

    # Single-step grids skip megacore coordination; multi-step grids have
    # sizable (>=512-row) tiles, so "parallel" sharding is worthwhile.
    dim_sems = ("parallel",) if grid[0] > 1 else ("arbitrary",)

    out = pl.pallas_call(
        mlp_kernel,
        out_shape=jax.ShapeDtypeStruct((Bp, ncls), jnp.float32),
        grid=grid,
        in_specs=[
            pl.BlockSpec((tb, in_size), lambda i: (i, 0)),  # x tile over batch
            _full_spec(prepared["w1"].shape, w_mode),
            _full_spec(prepared["b1"].shape, w_mode),
            _full_spec(prepared["w2"].shape, w_mode),
            _full_spec(prepared["b2"].shape, w_mode),
            _full_spec(prepared["w3"].shape, w_mode),
            _full_spec(prepared["b3"].shape, w_mode),
        ],
        out_specs=pl.BlockSpec((tb, ncls), lambda i: (i, 0)),
        compiler_params=pltpu.CompilerParams(
            dimension_semantics=dim_sems,
            vmem_limit_bytes=vmem_limit,
        ),
    )(x, prepared["w1"], prepared["b1"], prepared["w2"], prepared["b2"],
      prepared["w3"], prepared["b3"])

    return out[:B] if Bp != B else out


def init_params(key, input_size, hidden_size, num_classes, dtype=jnp.float32):
    """Deterministic init mimicking nn.Linear's U(-1/sqrt(fan_in), 1/sqrt(fan_in))."""
    ks = jax.random.split(key, 6)

    def linear(kw, kb, fan_in, fan_out):
        bound = 1.0 / jnp.sqrt(fan_in)
        w = jax.random.uniform(kw, (fan_in, fan_out), dtype, -bound, bound)
        b = jax.random.uniform(kb, (fan_out,), dtype, -bound, bound)
        return w, b

    w1, b1 = linear(ks[0], ks[1], input_size, hidden_size)
    w2, b2 = linear(ks[2], ks[3], hidden_size, hidden_size)
    w3, b3 = linear(ks[4], ks[5], hidden_size, num_classes)
    return {"w1": w1, "b1": b1, "w2": w2, "b2": b2, "w3": w3, "b3": b3}


def reference_forward_f32(x, params):
    h = jnp.maximum(x @ params["w1"] + params["b1"], 0.0)
    h = jnp.maximum(h @ params["w2"] + params["b2"], 0.0)
    return h @ params["w3"] + params["b3"]


def reference_forward_bf16(x, params):
    """Same numerics as the kernel (bf16 operands, f32 accumulate + bias)."""
    bf = jnp.bfloat16
    h = jnp.dot(x.astype(bf), params["w1"].astype(bf),
                preferred_element_type=jnp.float32) + params["b1"]
    h = jnp.maximum(h, 0.0)
    h = jnp.dot(h.astype(bf), params["w2"].astype(bf),
                preferred_element_type=jnp.float32) + params["b2"]
    h = jnp.maximum(h, 0.0)
    h = jnp.dot(h.astype(bf), params["w3"].astype(bf),
                preferred_element_type=jnp.float32) + params["b3"]
    return h


if __name__ == "__main__":
    key = jax.random.PRNGKey(0)
    k_x, k_p = jax.random.split(key)

    # Small model dims matching the toy module; batch 512 runs as a single
    # fat 512-row grid step (per the perf review, fewer/fatter steps win).
    batch, input_size, hidden_size, num_classes = 512, 32, 32, 16
    x = jax.random.normal(k_x, (batch, input_size), jnp.float32)
    params = init_params(k_p, input_size, hidden_size, num_classes)

    prepared = prepare_params(params)          # one-time, outside the hot path
    prepared = jax.block_until_ready(prepared)

    out = neural_net_forward(x, prepared)
    out = jax.block_until_ready(out)

    assert out.shape == (batch, num_classes)
    # Tight check against a reference with identical bf16/f32-accumulate
    # numerics, plus a loose check against the pure-f32 PyTorch semantics.
    ref_bf16 = reference_forward_bf16(x, params)
    ref_f32 = reference_forward_f32(x, params)
    assert jnp.allclose(out, ref_bf16, atol=1e-3, rtol=1e-3), "mismatch vs bf16 ref"
    assert jnp.allclose(out, ref_f32, atol=5e-2, rtol=5e-2), "mismatch vs f32 ref"

    print("KERNEL_OK")
</pallas_src>

<mosaic_0001>
module attributes {stable_mosaic.version = 11 : i64} {
  func.func @mlp_kernel(%arg0: i32, %arg1: memref<512x32xf32, #tpu.memory_space<vmem>>, %arg2: memref<32x32xbf16, #tpu.memory_space<vmem>>, %arg3: memref<1x32xf32, #tpu.memory_space<vmem>>, %arg4: memref<32x32xbf16, #tpu.memory_space<vmem>>, %arg5: memref<1x32xf32, #tpu.memory_space<vmem>>, %arg6: memref<32x16xbf16, #tpu.memory_space<vmem>>, %arg7: memref<1x16xf32, #tpu.memory_space<vmem>>, %arg8: memref<512x16xf32, #tpu.memory_space<vmem>>) attributes {dimension_semantics = [#tpu.dimension_semantics<arbitrary>], iteration_bounds = array<i64: 1>, scalar_prefetch = 0 : i64, scratch_operands = 0 : i64, tpu.core_type = #tpu.core_type<tc>, window_params = [{transform_indices = @transform_0, window_bounds = array<i64: 512, 32>}, {pipeline_mode = #tpu.pipeline_mode<synchronous>, transform_indices = @transform_1, window_bounds = array<i64: 32, 32>}, {pipeline_mode = #tpu.pipeline_mode<synchronous>, transform_indices = @transform_2, window_bounds = array<i64: 1, 32>}, {pipeline_mode = #tpu.pipeline_mode<synchronous>, transform_indices = @transform_3, window_bounds = array<i64: 32, 32>}, {pipeline_mode = #tpu.pipeline_mode<synchronous>, transform_indices = @transform_4, window_bounds = array<i64: 1, 32>}, {pipeline_mode = #tpu.pipeline_mode<synchronous>, transform_indices = @transform_5, window_bounds = array<i64: 32, 16>}, {pipeline_mode = #tpu.pipeline_mode<synchronous>, transform_indices = @transform_6, window_bounds = array<i64: 1, 16>}, {transform_indices = @transform_7, window_bounds = array<i64: 512, 16>}]} {
    %c0 = arith.constant 0 : index
    %c0_0 = arith.constant 0 : index
    %0 = vector.load %arg1[%c0, %c0_0] : memref<512x32xf32, #tpu.memory_space<vmem>>, vector<512x32xf32>
    %1 = arith.truncf %0 : vector<512x32xf32> to vector<512x32xbf16>
    %c0_1 = arith.constant 0 : index
    %c0_2 = arith.constant 0 : index
    %2 = vector.load %arg2[%c0_1, %c0_2] : memref<32x32xbf16, #tpu.memory_space<vmem>>, vector<32x32xbf16>
    %cst = arith.constant dense<0.000000e+00> : vector<512x32xf32>
    %3 = tpu.matmul %1, %2, %cst {dimension_numbers = #tpu.dot_dimension_numbers<[1], [0], [0], [1], [0, 0, 1, 1], [], []>} : vector<512x32xbf16>, vector<32x32xbf16>, vector<512x32xf32> -> vector<512x32xf32>
    %c0_3 = arith.constant 0 : index
    %c0_4 = arith.constant 0 : index
    %4 = vector.load %arg3[%c0_3, %c0_4] : memref<1x32xf32, #tpu.memory_space<vmem>>, vector<1x32xf32>
    %5 = vector.broadcast %4 : vector<1x32xf32> to vector<512x32xf32>
    %6 = arith.addf %3, %5 : vector<512x32xf32>
    %cst_5 = arith.constant 0.000000e+00 : f32
    %7 = vector.broadcast %cst_5 : f32 to vector<512x32xf32>
    %8 = arith.maximumf %6, %7 : vector<512x32xf32>
    %9 = arith.truncf %8 : vector<512x32xf32> to vector<512x32xbf16>
    %c0_6 = arith.constant 0 : index
    %c0_7 = arith.constant 0 : index
    %10 = vector.load %arg4[%c0_6, %c0_7] : memref<32x32xbf16, #tpu.memory_space<vmem>>, vector<32x32xbf16>
    %cst_8 = arith.constant dense<0.000000e+00> : vector<512x32xf32>
    %11 = tpu.matmul %9, %10, %cst_8 {dimension_numbers = #tpu.dot_dimension_numbers<[1], [0], [0], [1], [0, 0, 1, 1], [], []>} : vector<512x32xbf16>, vector<32x32xbf16>, vector<512x32xf32> -> vector<512x32xf32>
    %c0_9 = arith.constant 0 : index
    %c0_10 = arith.constant 0 : index
    %12 = vector.load %arg5[%c0_9, %c0_10] : memref<1x32xf32, #tpu.memory_space<vmem>>, vector<1x32xf32>
    %13 = vector.broadcast %12 : vector<1x32xf32> to vector<512x32xf32>
    %14 = arith.addf %11, %13 : vector<512x32xf32>
    %cst_11 = arith.constant 0.000000e+00 : f32
    %15 = vector.broadcast %cst_11 : f32 to vector<512x32xf32>
    %16 = arith.maximumf %14, %15 : vector<512x32xf32>
    %17 = arith.truncf %16 : vector<512x32xf32> to vector<512x32xbf16>
    %c0_12 = arith.constant 0 : index
    %c0_13 = arith.constant 0 : index
    %18 = vector.load %arg6[%c0_12, %c0_13] : memref<32x16xbf16, #tpu.memory_space<vmem>>, vector<32x16xbf16>
    %cst_14 = arith.constant dense<0.000000e+00> : vector<512x16xf32>
    %19 = tpu.matmul %17, %18, %cst_14 {dimension_numbers = #tpu.dot_dimension_numbers<[1], [0], [0], [1], [0, 0, 1, 1], [], []>} : vector<512x32xbf16>, vector<32x16xbf16>, vector<512x16xf32> -> vector<512x16xf32>
    %c0_15 = arith.constant 0 : index
    %c0_16 = arith.constant 0 : index
    %20 = vector.load %arg7[%c0_15, %c0_16] : memref<1x16xf32, #tpu.memory_space<vmem>>, vector<1x16xf32>
    %21 = vector.broadcast %20 : vector<1x16xf32> to vector<512x16xf32>
    %22 = arith.addf %19, %21 : vector<512x16xf32>
    %c0_17 = arith.constant 0 : index
    %c0_18 = arith.constant 0 : index
    %23 = vector.load %arg8[%c0_17, %c0_18] : memref<512x16xf32, #tpu.memory_space<vmem>>, vector<512x16xf32>
    tpu.vector_store %arg8[%c0_17, %c0_18], %22 {strides = array<i32>} : memref<512x16xf32, #tpu.memory_space<vmem>>, vector<512x16xf32>,
    return
  }
  func.func @transform_0(%arg0: i32) -> (i32, i32) {
    %c0_i32 = arith.constant 0 : i32
    %c0_i32_0 = arith.constant 0 : i32
    return %arg0, %c0_i32 : i32, i32
  }
  func.func @transform_1(%arg0: i32) -> (i32, i32) {
    %c0_i32 = arith.constant 0 : i32
    %c0_i32_0 = arith.constant 0 : i32
    %c0_i32_1 = arith.constant 0 : i32
    return %c0_i32, %c0_i32_0 : i32, i32
  }
  func.func @transform_2(%arg0: i32) -> (i32, i32) {
    %c0_i32 = arith.constant 0 : i32
    %c0_i32_0 = arith.constant 0 : i32
    %c0_i32_1 = arith.constant 0 : i32
    return %c0_i32, %c0_i32_0 : i32, i32
  }
  func.func @transform_3(%arg0: i32) -> (i32, i32) {
    %c0_i32 = arith.constant 0 : i32
    %c0_i32_0 = arith.constant 0 : i32
    %c0_i32_1 = arith.constant 0 : i32
    return %c0_i32, %c0_i32_0 : i32, i32
  }
  func.func @transform_4(%arg0: i32) -> (i32, i32) {
    %c0_i32 = arith.constant 0 : i32
    %c0_i32_0 = arith.constant 0 : i32
    %c0_i32_1 = arith.constant 0 : i32
    return %c0_i32, %c0_i32_0 : i32, i32
  }
  func.func @transform_5(%arg0: i32) -> (i32, i32) {
    %c0_i32 = arith.constant 0 : i32
    %c0_i32_0 = arith.constant 0 : i32
    %c0_i32_1 = arith.constant 0 : i32
    return %c0_i32, %c0_i32_0 : i32, i32
  }
  func.func @transform_6(%arg0: i32) -> (i32, i32) {
    %c0_i32 = arith.constant 0 : i32
    %c0_i32_0 = arith.constant 0 : i32
    %c0_i32_1 = arith.constant 0 : i32
    return %c0_i32, %c0_i32_0 : i32, i32
  }
  func.func @transform_7(%arg0: i32) -> (i32, i32) {
    %c0_i32 = arith.constant 0 : i32
    %c0_i32_0 = arith.constant 0 : i32
    return %arg0, %c0_i32 : i32, i32
  }
}

</mosaic_0001>

<llo_original>
// kernel: neural_net_forward.1
$region0: #{neural_net_forward.1}
  #allocation0 [shape = 'u32[]', space=smem, size = 0x4, offset = 0x4, fixed_abs, tag = 'smem constant byte address 0x4 - core index']
  #allocation1 [shape = 'u32[144,128]{1,0:T(1,128)}', space=vmem, size = 0x12000, scoped, tag = 'internal scratch']
  %s0 = inlined_call_operand.vmem [shape: f32[512,32], index: 0, kind: input, shape index: {}]
  %s1 = inlined_call_operand.vmem [shape: bf16[32,32], index: 1, kind: input, shape index: {}]
  %s2 = inlined_call_operand.vmem [shape: f32[1,32], index: 2, kind: input, shape index: {}]
  %s3 = inlined_call_operand.vmem [shape: bf16[32,32], index: 3, kind: input, shape index: {}]
  %s4 = inlined_call_operand.vmem [shape: f32[1,32], index: 4, kind: input, shape index: {}]
  %s5 = inlined_call_operand.vmem [shape: bf16[32,16], index: 5, kind: input, shape index: {}]
  %s6 = inlined_call_operand.vmem [shape: f32[1,16], index: 6, kind: input, shape index: {}]
  %s7 = inlined_call_operand.vmem [shape: f32[512,16], index: 7, kind: output, shape index: {}]
  %s8 = sld [smem:[#allocation0]]
  $region38: #{neural_net_forward.1} parent=0
    _
  %s10 = ssub.s32 1, %s8
  %s11 = scalar_select 0, %s10, %s8
  // Predicated region
  $region2: #{neural_net_forward.1} parent=0 // pred_check
    _
  $region3: #{neural_net_forward.1} parent=0 // pred_check_branch
    %13 = sbr.rel (0) target = $region5
  $region4: #{neural_net_forward.1} parent=0 // pred_region
    _
  $region5: #{neural_net_forward.1} parent=0 // pred_fallthru
    _
  // Predicated region
  $region6: #{neural_net_forward.1} parent=0 // pred_check
    _
  $region7: #{neural_net_forward.1} parent=0 // pred_check_branch
    %15 = sbr.rel (0) target = $region9
  $region8: #{neural_net_forward.1} parent=0 // pred_region
    _
  $region9: #{neural_net_forward.1} parent=0 // pred_fallthru
    _
  // Predicated region
  $region10: #{neural_net_forward.1} parent=0 // pred_check
    _
  $region11: #{neural_net_forward.1} parent=0 // pred_check_branch
    %17 = sbr.rel (0) target = $region13
  $region12: #{neural_net_forward.1} parent=0 // pred_region
    _
  $region13: #{neural_net_forward.1} parent=0 // pred_fallthru
    _
  // Predicated region
  $region14: #{neural_net_forward.1} parent=0 // pred_check
    _
  $region15: #{neural_net_forward.1} parent=0 // pred_check_branch
    %19 = sbr.rel (0) target = $region17
  $region16: #{neural_net_forward.1} parent=0 // pred_region
    _
  $region17: #{neural_net_forward.1} parent=0 // pred_fallthru
    _
  // Predicated region
  $region18: #{neural_net_forward.1} parent=0 // pred_check
    _
  $region19: #{neural_net_forward.1} parent=0 // pred_check_branch
    %21 = sbr.rel (0) target = $region21
  $region20: #{neural_net_forward.1} parent=0 // pred_region
    _
  $region21: #{neural_net_forward.1} parent=0 // pred_fallthru
    _
  // Predicated region
  $region22: #{neural_net_forward.1} parent=0 // pred_check
    _
  $region23: #{neural_net_forward.1} parent=0 // pred_check_branch
    %23 = sbr.rel (0) target = $region25
  $region24: #{neural_net_forward.1} parent=0 // pred_region
    _
  $region25: #{neural_net_forward.1} parent=0 // pred_fallthru
    _
  // Predicated region
  $region26: #{neural_net_forward.1} parent=0 // pred_check
    _
  $region27: #{neural_net_forward.1} parent=0 // pred_check_branch
    %25 = sbr.rel (0) target = $region29
  $region28: #{neural_net_forward.1} parent=0 // pred_region
    _
  $region29: #{neural_net_forward.1} parent=0 // pred_fallthru
    _
  %v27 = vld [vmem:[%s0] sm:$0xff]
  %v28 = vld [vmem:[%s0 + $0x8] sm:$0xff]
  %v29 = vld [vmem:[%s0 + $0x10] sm:$0xff]
  %v30 = vld [vmem:[%s0 + $0x18] sm:$0xff]
  %v31 = vld [vmem:[%s0 + $0x20] sm:$0xff]
  %v32 = vld [vmem:[%s0 + $0x28] sm:$0xff]
  %v33 = vld [vmem:[%s0 + $0x30] sm:$0xff]
  %v34 = vld [vmem:[%s0 + $0x38] sm:$0xff]
  %v35 = vld [vmem:[%s0 + $0x40] sm:$0xff]
  %v36 = vld [vmem:[%s0 + $0x48] sm:$0xff]
  %v37 = vld [vmem:[%s0 + $0x50] sm:$0xff]
  %v38 = vld [vmem:[%s0 + $0x58] sm:$0xff]
  %v39 = vld [vmem:[%s0 + $0x60] sm:$0xff]
  %v40 = vld [vmem:[%s0 + $0x68] sm:$0xff]
  %v41 = vld [vmem:[%s0 + $0x70] sm:$0xff]
  %v42 = vld [vmem:[%s0 + $0x78] sm:$0xff]
  %v43 = vld [vmem:[%s0 + $0x80] sm:$0xff]
  %v44 = vld [vmem:[%s0 + $0x88] sm:$0xff]
  %v45 = vld [vmem:[%s0 + $0x90] sm:$0xff]
  %v46 = vld [vmem:[%s0 + $0x98] sm:$0xff]
  %v47 = vld [vmem:[%s0 + $0xa0] sm:$0xff]
  %v48 = vld [vmem:[%s0 + $0xa8] sm:$0xff]
  %v49 = vld [vmem:[%s0 + $0xb0] sm:$0xff]
  %v50 = vld [vmem:[%s0 + $0xb8] sm:$0xff]
  %v51 = vld [vmem:[%s0 + $0xc0] sm:$0xff]
  %v52 = vld [vmem:[%s0 + $0xc8] sm:$0xff]
  %v53 = vld [vmem:[%s0 + $0xd0] sm:$0xff]
  %v54 = vld [vmem:[%s0 + $0xd8] sm:$0xff]
  %v55 = vld [vmem:[%s0 + $0xe0] sm:$0xff]
  %v56 = vld [vmem:[%s0 + $0xe8] sm:$0xff]
  %v57 = vld [vmem:[%s0 + $0xf0] sm:$0xff]
  %v58 = vld [vmem:[%s0 + $0xf8] sm:$0xff]
  %v59 = vld [vmem:[%s0 + $0x100] sm:$0xff]
  %v60 = vld [vmem:[%s0 + $0x108] sm:$0xff]
  %v61 = vld [vmem:[%s0 + $0x110] sm:$0xff]
  %v62 = vld [vmem:[%s0 + $0x118] sm:$0xff]
  %v63 = vld [vmem:[%s0 + $0x120] sm:$0xff]
  %v64 = vld [vmem:[%s0 + $0x128] sm:$0xff]
  %v65 = vld [vmem:[%s0 + $0x130] sm:$0xff]
  %v66 = vld [vmem:[%s0 + $0x138] sm:$0xff]
  %v67 = vld [vmem:[%s0 + $0x140] sm:$0xff]
  %v68 = vld [vmem:[%s0 + $0x148] sm:$0xff]
  %v69 = vld [vmem:[%s0 + $0x150] sm:$0xff]
  %v70 = vld [vmem:[%s0 + $0x158] sm:$0xff]
  %v71 = vld [vmem:[%s0 + $0x160] sm:$0xff]
  %v72 = vld [vmem:[%s0 + $0x168] sm:$0xff]
  %v73 = vld [vmem:[%s0 + $0x170] sm:$0xff]
  %v74 = vld [vmem:[%s0 + $0x178] sm:$0xff]
  %v75 = vld [vmem:[%s0 + $0x180] sm:$0xff]
  %v76 = vld [vmem:[%s0 + $0x188] sm:$0xff]
  %v77 = vld [vmem:[%s0 + $0x190] sm:$0xff]
  %v78 = vld [vmem:[%s0 + $0x198] sm:$0xff]
  %v79 = vld [vmem:[%s0 + $0x1a0] sm:$0xff]
  %v80 = vld [vmem:[%s0 + $0x1a8] sm:$0xff]
  %v81 = vld [vmem:[%s0 + $0x1b0] sm:$0xff]
  %v82 = vld [vmem:[%s0 + $0x1b8] sm:$0xff]
  %v83 = vld [vmem:[%s0 + $0x1c0] sm:$0xff]
  %v84 = vld [vmem:[%s0 + $0x1c8] sm:$0xff]
  %v85 = vld [vmem:[%s0 + $0x1d0] sm:$0xff]
  %v86 = vld [vmem:[%s0 + $0x1d8] sm:$0xff]
  %v87 = vld [vmem:[%s0 + $0x1e0] sm:$0xff]
  %v88 = vld [vmem:[%s0 + $0x1e8] sm:$0xff]
  %v89 = vld [vmem:[%s0 + $0x1f0] sm:$0xff]
  %v90 = vld [vmem:[%s0 + $0x1f8] sm:$0xff]
  %v91 = vpack.c.bf16 %v28, %v27
  %v92 = vpack.c.bf16 %v30, %v29
  %v93 = vpack.c.bf16 %v32, %v31
  %v94 = vpack.c.bf16 %v34, %v33
  %v95 = vpack.c.bf16 %v36, %v35
  %v96 = vpack.c.bf16 %v38, %v37
  %v97 = vpack.c.bf16 %v40, %v39
  %v98 = vpack.c.bf16 %v42, %v41
  %v99 = vpack.c.bf16 %v44, %v43
  %v100 = vpack.c.bf16 %v46, %v45
  %v101 = vpack.c.bf16 %v48, %v47
  %v102 = vpack.c.bf16 %v50, %v49
  %v103 = vpack.c.bf16 %v52, %v51
  %v104 = vpack.c.bf16 %v54, %v53
  %v105 = vpack.c.bf16 %v56, %v55
  %v106 = vpack.c.bf16 %v58, %v57
  %v107 = vpack.c.bf16 %v60, %v59
  %v108 = vpack.c.bf16 %v62, %v61
  %v109 = vpack.c.bf16 %v64, %v63
  %v110 = vpack.c.bf16 %v66, %v65
  %v111 = vpack.c.bf16 %v68, %v67
  %v112 = vpack.c.bf16 %v70, %v69
  %v113 = vpack.c.bf16 %v72, %v71
  %v114 = vpack.c.bf16 %v74, %v73
  %v115 = vpack.c.bf16 %v76, %v75
  %v116 = vpack.c.bf16 %v78, %v77
  %v117 = vpack.c.bf16 %v80, %v79
  %v118 = vpack.c.bf16 %v82, %v81
  %v119 = vpack.c.bf16 %v84, %v83
  %v120 = vpack.c.bf16 %v86, %v85
  %v121 = vpack.c.bf16 %v88, %v87
  %v122 = vpack.c.bf16 %v90, %v89
  %v123 = vld [vmem:[%s1] sm:$0xf]
  %v124 = vld [vmem:[%s1 + $0x4] sm:$0xf]
  %v125 = vld [vmem:[%s1 + $0x8] sm:$0xf]
  %v126 = vld [vmem:[%s1 + $0xc] sm:$0xf]
  %v127 = vld [vmem:[%s2] sm:$0x1]
  %v129 = vlaneseq
  %v130 = vshrl.u32 %v129, 7
  %v131 = vsub.s32 0, %v130
  %v132 = vrot.slane %v127, %v131
  %v138 = vunpack.c.l.b16 %v123
  %v139 = vunpack.c.l.b16 %v124
  %v140 = vunpack.c.l.b16 %v125
  %v141 = vunpack.c.l.b16 %v126
  %v142 = vpack.c.b16 %v139, %v138
  %v143 = vpack.c.b16 %v141, %v140
  %vm146 = vcmask 261120
  %v148 = vsel %vm146, %v91, 0
  %v151 = vsel %vm146, %v92, 0
  %v154 = vsel %vm146, %v93, 0
  %v157 = vsel %vm146, %v94, 0
  %v160 = vsel %vm146, %v95, 0
  %v163 = vsel %vm146, %v96, 0
  %v166 = vsel %vm146, %v97, 0
  %v169 = vsel %vm146, %v98, 0
  %v172 = vsel %vm146, %v99, 0
  %v175 = vsel %vm146, %v100, 0
  %v178 = vsel %vm146, %v101, 0
  %v181 = vsel %vm146, %v102, 0
  %v184 = vsel %vm146, %v103, 0
  %v187 = vsel %vm146, %v104, 0
  %v190 = vsel %vm146, %v105, 0
  %v193 = vsel %vm146, %v106, 0
  %v196 = vsel %vm146, %v107, 0
  %v199 = vsel %vm146, %v108, 0
  %v202 = vsel %vm146, %v109, 0
  %v205 = vsel %vm146, %v110, 0
  %v208 = vsel %vm146, %v111, 0
  %v211 = vsel %vm146, %v112, 0
  %v214 = vsel %vm146, %v113, 0
  %v217 = vsel %vm146, %v114, 0
  %v220 = vsel %vm146, %v115, 0
  %v223 = vsel %vm146, %v116, 0
  %v226 = vsel %vm146, %v117, 0
  %v229 = vsel %vm146, %v118, 0
  %v232 = vsel %vm146, %v119, 0
  %v235 = vsel %vm146, %v120, 0
  %v238 = vsel %vm146, %v121, 0
  %v241 = vsel %vm146, %v122, 0
  %243 = vmatprep.subr.bf16.mxu0 0
  %244 = vmatpush1.bf16.msra.mxu0 %v142
  %245 = vmatprep.subr.bf16.mxu0 0
  %246 = vmatpush1.bf16.msra.mxu0 %v143
  %247 = vmatprep.subr.bf16.mxu0 0
  %248 = vmatpush1.bf16.msra.mxu0 0
  %249 = vmatprep.subr.bf16.mxu0 0
  %250 = vmatpush1.bf16.msra.mxu0 0
  %251 = vmatprep.subr.bf16.mxu0 0
  %252 = vmatpush1.bf16.msra.mxu0 0
  %253 = vmatprep.subr.bf16.mxu0 0
  %254 = vmatpush1.bf16.msra.mxu0 0
  %255 = vmatprep.subr.bf16.mxu0 0
  %256 = vmatpush1.bf16.msra.mxu0 0
  %257 = vmatprep.subr.bf16.mxu0 0
  %258 = vmatpush1.bf16.msra.mxu0 0
  %259 = vmatprep.subr.bf16.mxu0 0
  %260 = vmatpush1.bf16.msra.mxu0 0
  %261 = vmatprep.subr.bf16.mxu0 0
  %262 = vmatpush1.bf16.msra.mxu0 0
  %263 = vmatprep.subr.bf16.mxu0 0
  %264 = vmatpush1.bf16.msra.mxu0 0
  %265 = vmatprep.subr.bf16.mxu0 0
  %266 = vmatpush1.bf16.msra.mxu0 0
  %267 = vmatprep.subr.bf16.mxu0 0
  %268 = vmatpush1.bf16.msra.mxu0 0
  %269 = vmatprep.subr.bf16.mxu0 0
  %270 = vmatpush1.bf16.msra.mxu0 0
  %271 = vmatprep.subr.bf16.mxu0 0
  %272 = vmatpush1.bf16.msra.mxu0 0
  %273 = vmatprep.subr.bf16.mxu0 0
  %274 = vmatpush1.bf16.msra.mxu0 0
  %275 = vmatprep.mubr.bf16.mxu0 0
  %276 = vmatmul.mubr.bf16.gmra.mrb[0].mxu0 %v148
  %v277 = vpop.f32.mrb[0].mxu0
  %v278 = vadd.f32 %v132, %v277
  %v279 = vpop.f32.mrb[0].mxu0
  %v280 = vpop.f32.mrb[0].mxu0
  %v281 = vadd.f32 %v132, %v280
  %v282 = vpop.f32.mrb[0].mxu0
  %283 = vmatprep.mubr.bf16.mxu0 0
  %284 = vmatmul.mubr.bf16.gmra.mrb[0].mxu0 %v151
  %v285 = vpop.f32.mrb[0].mxu0
  %v286 = vadd.f32 %v132, %v285
  %v287 = vpop.f32.mrb[0].mxu0
  %v288 = vpop.f32.mrb[0].mxu0
  %v289 = vadd.f32 %v132, %v288
  %v290 = vpop.f32.mrb[0].mxu0
  %291 = vmatprep.mubr.bf16.mxu0 0
  %292 = vmatmul.mubr.bf16.gmra.mrb[0].mxu0 %v154
  %v293 = vpop.f32.mrb[0].mxu0
  %v294 = vadd.f32 %v132, %v293
  %v295 = vpop.f32.mrb[0].mxu0
  %v296 = vpop.f32.mrb[0].mxu0
  %v297 = vadd.f32 %v132, %v296
  %v298 = vpop.f32.mrb[0].mxu0
  %299 = vmatprep.mubr.bf16.mxu0 0
  %300 = vmatmul.mubr.bf16.gmra.mrb[0].mxu0 %v157
  %v301 = vpop.f32.mrb[0].mxu0
  %v302 = vadd.f32 %v132, %v301
  %v303 = vpop.f32.mrb[0].mxu0
  %v304 = vpop.f32.mrb[0].mxu0
  %v305 = vadd.f32 %v132, %v304
  %v306 = vpop.f32.mrb[0].mxu0
  %307 = vmatprep.mubr.bf16.mxu0 0
  %308 = vmatmul.mubr.bf16.gmra.mrb[0].mxu0 %v160
  %v309 = vpop.f32.mrb[0].mxu0
  %v310 = vadd.f32 %v132, %v309
  %v311 = vpop.f32.mrb[0].mxu0
  %v312 = vpop.f32.mrb[0].mxu0
  %v313 = vadd.f32 %v132, %v312
  %v314 = vpop.f32.mrb[0].mxu0
  %315 = vmatprep.mubr.bf16.mxu0 0
  %316 = vmatmul.mubr.bf16.gmra.mrb[0].mxu0 %v163
  %v317 = vpop.f32.mrb[0].mxu0
  %v318 = vadd.f32 %v132, %v317
  %v319 = vpop.f32.mrb[0].mxu0
  %v320 = vpop.f32.mrb[0].mxu0
  %v321 = vadd.f32 %v132, %v320
  %v322 = vpop.f32.mrb[0].mxu0
  %323 = vmatprep.mubr.bf16.mxu0 0
  %324 = vmatmul.mubr.bf16.gmra.mrb[0].mxu0 %v166
  %v325 = vpop.f32.mrb[0].mxu0
  %v326 = vadd.f32 %v132, %v325
  %v327 = vpop.f32.mrb[0].mxu0
  %v328 = vpop.f32.mrb[0].mxu0
  %v329 = vadd.f32 %v132, %v328
  %v330 = vpop.f32.mrb[0].mxu0
  %331 = vmatprep.mubr.bf16.mxu0 0
  %332 = vmatmul.mubr.bf16.gmra.mrb[0].mxu0 %v169
  %v333 = vpop.f32.mrb[0].mxu0
  %v334 = vadd.f32 %v132, %v333
  %v335 = vpop.f32.mrb[0].mxu0
  %v336 = vpop.f32.mrb[0].mxu0
  %v337 = vadd.f32 %v132, %v336
  %v338 = vpop.f32.mrb[0].mxu0
  %339 = vmatprep.mubr.bf16.mxu0 0
  %340 = vmatmul.mubr.bf16.gmra.mrb[0].mxu0 %v172
  %v341 = vpop.f32.mrb[0].mxu0
  %v342 = vadd.f32 %v132, %v341
  %v343 = vpop.f32.mrb[0].mxu0
  %v344 = vpop.f32.mrb[0].mxu0
  %v345 = vadd.f32 %v132, %v344
  %v346 = vpop.f32.mrb[0].mxu0
  %347 = vmatprep.mubr.bf16.mxu0 0
  %348 = vmatmul.mubr.bf16.gmra.mrb[0].mxu0 %v175
  %v349 = vpop.f32.mrb[0].mxu0
  %v350 = vadd.f32 %v132, %v349
  %v351 = vpop.f32.mrb[0].mxu0
  %v352 = vpop.f32.mrb[0].mxu0
  %v353 = vadd.f32 %v132, %v352
  %v354 = vpop.f32.mrb[0].mxu0
  %355 = vmatprep.mubr.bf16.mxu0 0
  %356 = vmatmul.mubr.bf16.gmra.mrb[0].mxu0 %v178
  %v357 = vpop.f32.mrb[0].mxu0
  %v358 = vadd.f32 %v132, %v357
  %v359 = vpop.f32.mrb[0].mxu0
  %v360 = vpop.f32.mrb[0].mxu0
  %v361 = vadd.f32 %v132, %v360
  %v362 = vpop.f32.mrb[0].mxu0
  %363 = vmatprep.mubr.bf16.mxu0 0
  %364 = vmatmul.mubr.bf16.gmra.mrb[0].mxu0 %v181
  %v365 = vpop.f32.mrb[0].mxu0
  %v366 = vadd.f32 %v132, %v365
  %v367 = vpop.f32.mrb[0].mxu0
  %v368 = vpop.f32.mrb[0].mxu0
  %v369 = vadd.f32 %v132, %v368
  %v370 = vpop.f32.mrb[0].mxu0
  %371 = vmatprep.mubr.bf16.mxu0 0
  %372 = vmatmul.mubr.bf16.gmra.mrb[0].mxu0 %v184
  %v373 = vpop.f32.mrb[0].mxu0
  %v374 = vadd.f32 %v132, %v373
  %v375 = vpop.f32.mrb[0].mxu0
  %v376 = vpop.f32.mrb[0].mxu0
  %v377 = vadd.f32 %v132, %v376
  %v378 = vpop.f32.mrb[0].mxu0
  %379 = vmatprep.mubr.bf16.mxu0 0
  %380 = vmatmul.mubr.bf16.gmra.mrb[0].mxu0 %v187
  %v381 = vpop.f32.mrb[0].mxu0
  %v382 = vadd.f32 %v132, %v381
  %v383 = vpop.f32.mrb[0].mxu0
  %v384 = vpop.f32.mrb[0].mxu0
  %v385 = vadd.f32 %v132, %v384
  %v386 = vpop.f32.mrb[0].mxu0
  %387 = vmatprep.mubr.bf16.mxu0 0
  %388 = vmatmul.mubr.bf16.gmra.mrb[0].mxu0 %v190
  %v389 = vpop.f32.mrb[0].mxu0
  %v390 = vadd.f32 %v132, %v389
  %v391 = vpop.f32.mrb[0].mxu0
  %v392 = vpop.f32.mrb[0].mxu0
  %v393 = vadd.f32 %v132, %v392
  %v394 = vpop.f32.mrb[0].mxu0
  %395 = vmatprep.mubr.bf16.mxu0 0
  %396 = vmatmul.mubr.bf16.gmra.mrb[0].mxu0 %v193
  %v397 = vpop.f32.mrb[0].mxu0
  %v398 = vadd.f32 %v132, %v397
  %v399 = vpop.f32.mrb[0].mxu0
  %v400 = vpop.f32.mrb[0].mxu0
  %v401 = vadd.f32 %v132, %v400
  %v402 = vpop.f32.mrb[0].mxu0
  %403 = vmatprep.mubr.bf16.mxu0 0
  %404 = vmatmul.mubr.bf16.gmra.mrb[0].mxu0 %v196
  %v405 = vpop.f32.mrb[0].mxu0
  %v406 = vadd.f32 %v132, %v405
  %v407 = vpop.f32.mrb[0].mxu0
  %v408 = vpop.f32.mrb[0].mxu0
  %v409 = vadd.f32 %v132, %v408
  %v410 = vpop.f32.mrb[0].mxu0
  %411 = vmatprep.mubr.bf16.mxu0 0
  %412 = vmatmul.mubr.bf16.gmra.mrb[0].mxu0 %v199
  %v413 = vpop.f32.mrb[0].mxu0
  %v414 = vadd.f32 %v132, %v413
  %v415 = vpop.f32.mrb[0].mxu0
  %v416 = vpop.f32.mrb[0].mxu0
  %v417 = vadd.f32 %v132, %v416
  %v418 = vpop.f32.mrb[0].mxu0
  %419 = vmatprep.mubr.bf16.mxu0 0
  %420 = vmatmul.mubr.bf16.gmra.mrb[0].mxu0 %v202
  %v421 = vpop.f32.mrb[0].mxu0
  %v422 = vadd.f32 %v132, %v421
  %v423 = vpop.f32.mrb[0].mxu0
  %v424 = vpop.f32.mrb[0].mxu0
  %v425 = vadd.f32 %v132, %v424
  %v426 = vpop.f32.mrb[0].mxu0
  %427 = vmatprep.mubr.bf16.mxu0 0
  %428 = vmatmul.mubr.bf16.gmra.mrb[0].mxu0 %v205
  %v429 = vpop.f32.mrb[0].mxu0
  %v430 = vadd.f32 %v132, %v429
  %v431 = vpop.f32.mrb[0].mxu0
  %v432 = vpop.f32.mrb[0].mxu0
  %v433 = vadd.f32 %v132, %v432
  %v434 = vpop.f32.mrb[0].mxu0
  %435 = vmatprep.mubr.bf16.mxu0 0
  %436 = vmatmul.mubr.bf16.gmra.mrb[0].mxu0 %v208
  %v437 = vpop.f32.mrb[0].mxu0
  %v438 = vadd.f32 %v132, %v437
  %v439 = vpop.f32.mrb[0].mxu0
  %v440 = vpop.f32.mrb[0].mxu0
  %v441 = vadd.f32 %v132, %v440
  %v442 = vpop.f32.mrb[0].mxu0
  %443 = vmatprep.mubr.bf16.mxu0 0
  %444 = vmatmul.mubr.bf16.gmra.mrb[0].mxu0 %v211
  %v445 = vpop.f32.mrb[0].mxu0
  %v446 = vadd.f32 %v132, %v445
  %v447 = vpop.f32.mrb[0].mxu0
  %v448 = vpop.f32.mrb[0].mxu0
  %v449 = vadd.f32 %v132, %v448
  %v450 = vpop.f32.mrb[0].mxu0
  %451 = vmatprep.mubr.bf16.mxu0 0
  %452 = vmatmul.mubr.bf16.gmra.mrb[0].mxu0 %v214
  %v453 = vpop.f32.mrb[0].mxu0
  %v454 = vadd.f32 %v132, %v453
  %v455 = vpop.f32.mrb[0].mxu0
  %v456 = vpop.f32.mrb[0].mxu0
  %v457 = vadd.f32 %v132, %v456
  %v458 = vpop.f32.mrb[0].mxu0
  %459 = vmatprep.mubr.bf16.mxu0 0
  %460 = vmatmul.mubr.bf16.gmra.mrb[0].mxu0 %v217
  %v461 = vpop.f32.mrb[0].mxu0
  %v462 = vadd.f32 %v132, %v461
  %v463 = vpop.f32.mrb[0].mxu0
  %v464 = vpop.f32.mrb[0].mxu0
  %v465 = vadd.f32 %v132, %v464
  %v466 = vpop.f32.mrb[0].mxu0
  %467 = vmatprep.mubr.bf16.mxu0 0
  %468 = vmatmul.mubr.bf16.gmra.mrb[0].mxu0 %v220
  %v469 = vpop.f32.mrb[0].mxu0
  %v470 = vadd.f32 %v132, %v469
  %v471 = vpop.f32.mrb[0].mxu0
  %v472 = vpop.f32.mrb[0].mxu0
  %v473 = vadd.f32 %v132, %v472
  %v474 = vpop.f32.mrb[0].mxu0
  %475 = vmatprep.mubr.bf16.mxu0 0
  %476 = vmatmul.mubr.bf16.gmra.mrb[0].mxu0 %v223
  %v477 = vpop.f32.mrb[0].mxu0
  %v478 = vadd.f32 %v132, %v477
  %v479 = vpop.f32.mrb[0].mxu0
  %v480 = vpop.f32.mrb[0].mxu0
  %v481 = vadd.f32 %v132, %v480
  %v482 = vpop.f32.mrb[0].mxu0
  %483 = vmatprep.mubr.bf16.mxu0 0
  %484 = vmatmul.mubr.bf16.gmra.mrb[0].mxu0 %v226
  %v485 = vpop.f32.mrb[0].mxu0
  %v486 = vadd.f32 %v132, %v485
  %v487 = vpop.f32.mrb[0].mxu0
  %v488 = vpop.f32.mrb[0].mxu0
  %v489 = vadd.f32 %v132, %v488
  %v490 = vpop.f32.mrb[0].mxu0
  %491 = vmatprep.mubr.bf16.mxu0 0
  %492 = vmatmul.mubr.bf16.gmra.mrb[0].mxu0 %v229
  %v493 = vpop.f32.mrb[0].mxu0
  %v494 = vadd.f32 %v132, %v493
  %v495 = vpop.f32.mrb[0].mxu0
  %v496 = vpop.f32.mrb[0].mxu0
  %v497 = vadd.f32 %v132, %v496
  %v498 = vpop.f32.mrb[0].mxu0
  %499 = vmatprep.mubr.bf16.mxu0 0
  %500 = vmatmul.mubr.bf16.gmra.mrb[0].mxu0 %v232
  %v501 = vpop.f32.mrb[0].mxu0
  %v502 = vadd.f32 %v132, %v501
  %v503 = vpop.f32.mrb[0].mxu0
  %v504 = vpop.f32.mrb[0].mxu0
  %v505 = vadd.f32 %v132, %v504
  %v506 = vpop.f32.mrb[0].mxu0
  %507 = vmatprep.mubr.bf16.mxu0 0
  %508 = vmatmul.mubr.bf16.gmra.mrb[0].mxu0 %v235
  %v509 = vpop.f32.mrb[0].mxu0
  %v510 = vadd.f32 %v132, %v509
  %v511 = vpop.f32.mrb[0].mxu0
  %v512 = vpop.f32.mrb[0].mxu0
  %v513 = vadd.f32 %v132, %v512
  %v514 = vpop.f32.mrb[0].mxu0
  %515 = vmatprep.mubr.bf16.mxu0 0
  %516 = vmatmul.mubr.bf16.gmra.mrb[0].mxu0 %v238
  %v517 = vpop.f32.mrb[0].mxu0
  %v518 = vadd.f32 %v132, %v517
  %v519 = vpop.f32.mrb[0].mxu0
  %v520 = vpop.f32.mrb[0].mxu0
  %v521 = vadd.f32 %v132, %v520
  %v522 = vpop.f32.mrb[0].mxu0
  %523 = vmatprep.mubr.bf16.mxu0 0
  %524 = vmatmul.mubr.bf16.gmra.mrb[0].mxu0 %v241
  %v525 = vpop.f32.mrb[0].mxu0
  %v526 = vadd.f32 %v132, %v525
  %v527 = vpop.f32.mrb[0].mxu0
  %v528 = vpop.f32.mrb[0].mxu0
  %v529 = vadd.f32 %v132, %v528
  %v530 = vpop.f32.mrb[0].mxu0
  %531 = vdwg.mxu0
  %v532 = vmax.f32 %v278, 0.0
  %v533 = vmax.f32 %v281, 0.0
  %v534 = vmax.f32 %v286, 0.0
  %v535 = vmax.f32 %v289, 0.0
  %v536 = vmax.f32 %v294, 0.0
  %v537 = vmax.f32 %v297, 0.0
  %v538 = vmax.f32 %v302, 0.0
  %v539 = vmax.f32 %v305, 0.0
  %v540 = vmax.f32 %v310, 0.0
  %v541 = vmax.f32 %v313, 0.0
  %v542 = vmax.f32 %v318, 0.0
  %v543 = vmax.f32 %v321, 0.0
  %v544 = vmax.f32 %v326, 0.0
  %v545 = vmax.f32 %v329, 0.0
  %v546 = vmax.f32 %v334, 0.0
  %v547 = vmax.f32 %v337, 0.0
  %v548 = vmax.f32 %v342, 0.0
  %v549 = vmax.f32 %v345, 0.0
  %v550 = vmax.f32 %v350, 0.0
  %v551 = vmax.f32 %v353, 0.0
  %v552 = vmax.f32 %v358, 0.0
  %v553 = vmax.f32 %v361, 0.0
  %v554 = vmax.f32 %v366, 0.0
  %v555 = vmax.f32 %v369, 0.0
  %v556 = vmax.f32 %v374, 0.0
  %v557 = vmax.f32 %v377, 0.0
  %v558 = vmax.f32 %v382, 0.0
  %v559 = vmax.f32 %v385, 0.0
  %v560 = vmax.f32 %v390, 0.0
  %v561 = vmax.f32 %v393, 0.0
  %v562 = vmax.f32 %v398, 0.0
  %v563 = vmax.f32 %v401, 0.0
  %v564 = vmax.f32 %v406, 0.0
  %v565 = vmax.f32 %v409, 0.0
  %v566 = vmax.f32 %v414, 0.0
  %v567 = vmax.f32 %v417, 0.0
  %v568 = vmax.f32 %v422, 0.0
  %v569 = vmax.f32 %v425, 0.0
  %v570 = vmax.f32 %v430, 0.0
  %v571 = vmax.f32 %v433, 0.0
  %v572 = vmax.f32 %v438, 0.0
  %v573 = vmax.f32 %v441, 0.0
  %v574 = vmax.f32 %v446, 0.0
  %v575 = vmax.f32 %v449, 0.0
  %v576 = vmax.f32 %v454, 0.0
  %v577 = vmax.f32 %v457, 0.0
  %v578 = vmax.f32 %v462, 0.0
  %v579 = vmax.f32 %v465, 0.0
  %v580 = vmax.f32 %v470, 0.0
  %v581 = vmax.f32 %v473, 0.0
  %v582 = vmax.f32 %v478, 0.0
  %v583 = vmax.f32 %v481, 0.0
  %v584 = vmax.f32 %v486, 0.0
  %v585 = vmax.f32 %v489, 0.0
  %v586 = vmax.f32 %v494, 0.0
  %v587 = vmax.f32 %v497, 0.0
  %v588 = vmax.f32 %v502, 0.0
  %v589 = vmax.f32 %v505, 0.0
  %v590 = vmax.f32 %v510, 0.0
  %v591 = vmax.f32 %v513, 0.0
  %v592 = vmax.f32 %v518, 0.0
  %v593 = vmax.f32 %v521, 0.0
  %v594 = vmax.f32 %v526, 0.0
  %v595 = vmax.f32 %v529, 0.0
  %v596 = vpack.c.bf16 %v533, %v532
  %v597 = vpack.c.bf16 %v535, %v534
  %v598 = vpack.c.bf16 %v537, %v536
  %v599 = vpack.c.bf16 %v539, %v538
  %v600 = vpack.c.bf16 %v541, %v540
  %v601 = vpack.c.bf16 %v543, %v542
  %v602 = vpack.c.bf16 %v545, %v544
  %v603 = vpack.c.bf16 %v547, %v546
  %v604 = vpack.c.bf16 %v549, %v548
  %v605 = vpack.c.bf16 %v551, %v550
  %v606 = vpack.c.bf16 %v553, %v552
  %v607 = vpack.c.bf16 %v555, %v554
  %v608 = vpack.c.bf16 %v557, %v556
  %v609 = vpack.c.bf16 %v559, %v558
  %v610 = vpack.c.bf16 %v561, %v560
  %v611 = vpack.c.bf16 %v563, %v562
  %v612 = vpack.c.bf16 %v565, %v564
  %v613 = vpack.c.bf16 %v567, %v566
  %v614 = vpack.c.bf16 %v569, %v568
  %v615 = vpack.c.bf16 %v571, %v570
  %v616 = vpack.c.bf16 %v573, %v572
  %v617 = vpack.c.bf16 %v575, %v574
  %v618 = vpack.c.bf16 %v577, %v576
  %v619 = vpack.c.bf16 %v579, %v578
  %v620 = vpack.c.bf16 %v581, %v580
  %v621 = vpack.c.bf16 %v583, %v582
  %v622 = vpack.c.bf16 %v585, %v584
  %v623 = vpack.c.bf16 %v587, %v586
  %v624 = vpack.c.bf16 %v589, %v588
  %v625 = vpack.c.bf16 %v591, %v590
  %v626 = vpack.c.bf16 %v593, %v592
  %v627 = vpack.c.bf16 %v595, %v594
  %v628 = vld [vmem:[%s3] sm:$0xf]
  %v629 = vld [vmem:[%s3 + $0x4] sm:$0xf]
  %v630 = vld [vmem:[%s3 + $0x8] sm:$0xf]
  %v631 = vld [vmem:[%s3 + $0xc] sm:$0xf]
  %v632 = vld [vmem:[%s4] sm:$0x1]
  %v634 = vlaneseq
  %v635 = vshrl.u32 %v634, 7
  %v636 = vsub.s32 0, %v635
  %v637 = vrot.slane %v632, %v636
  %v643 = vunpack.c.l.b16 %v628
  %v644 = vunpack.c.l.b16 %v629
  %v645 = vunpack.c.l.b16 %v630
  %v646 = vunpack.c.l.b16 %v631
  %v647 = vpack.c.b16 %v644, %v643
  %v648 = vpack.c.b16 %v646, %v645
  %v652 = vsel %vm146, %v596, 0
  %v655 = vsel %vm146, %v597, 0
  %v658 = vsel %vm146, %v598, 0
  %v661 = vsel %vm146, %v599, 0
  %v664 = vsel %vm146, %v600, 0
  %v667 = vsel %vm146, %v601, 0
  %v670 = vsel %vm146, %v602, 0
  %v673 = vsel %vm146, %v603, 0
  %v676 = vsel %vm146, %v604, 0
  %v679 = vsel %vm146, %v605, 0
  %v682 = vsel %vm146, %v606, 0
  %v685 = vsel %vm146, %v607, 0
  %v688 = vsel %vm146, %v608, 0
  %v691 = vsel %vm146, %v609, 0
  %v694 = vsel %vm146, %v610, 0
  %v697 = vsel %vm146, %v611, 0
  %v700 = vsel %vm146, %v612, 0
  %v703 = vsel %vm146, %v613, 0
  %v706 = vsel %vm146, %v614, 0
  %v709 = vsel %vm146, %v615, 0
  %v712 = vsel %vm146, %v616, 0
  %v715 = vsel %vm146, %v617, 0
  %v718 = vsel %vm146, %v618, 0
  %v721 = vsel %vm146, %v619, 0
  %v724 = vsel %vm146, %v620, 0
  %v727 = vsel %vm146, %v621, 0
  %v730 = vsel %vm146, %v622, 0
  %v733 = vsel %vm146, %v623, 0
  %v736 = vsel %vm146, %v624, 0
  %v739 = vsel %vm146, %v625, 0
  %v742 = vsel %vm146, %v626, 0
  %v745 = vsel %vm146, %v627, 0
  %747 = vmatprep.subr.bf16.mxu0 0
  %748 = vmatpush1.bf16.msra.mxu0 %v647
  %749 = vmatprep.subr.bf16.mxu0 0
  %750 = vmatpush1.bf16.msra.mxu0 %v648
  %751 = vmatprep.subr.bf16.mxu0 0
  %752 = vmatpush1.bf16.msra.mxu0 0
  %753 = vmatprep.subr.bf16.mxu0 0
  %754 = vmatpush1.bf16.msra.mxu0 0
  %755 = vmatprep.subr.bf16.mxu0 0
  %756 = vmatpush1.bf16.msra.mxu0 0
  %757 = vmatprep.subr.bf16.mxu0 0
  %758 = vmatpush1.bf16.msra.mxu0 0
  %759 = vmatprep.subr.bf16.mxu0 0
  %760 = vmatpush1.bf16.msra.mxu0 0
  %761 = vmatprep.subr.bf16.mxu0 0
  %762 = vmatpush1.bf16.msra.mxu0 0
  %763 = vmatprep.subr.bf16.mxu0 0
  %764 = vmatpush1.bf16.msra.mxu0 0
  %765 = vmatprep.subr.bf16.mxu0 0
  %766 = vmatpush1.bf16.msra.mxu0 0
  %767 = vmatprep.subr.bf16.mxu0 0
  %768 = vmatpush1.bf16.msra.mxu0 0
  %769 = vmatprep.subr.bf16.mxu0 0
  %770 = vmatpush1.bf16.msra.mxu0 0
  %771 = vmatprep.subr.bf16.mxu0 0
  %772 = vmatpush1.bf16.msra.mxu0 0
  %773 = vmatprep.subr.bf16.mxu0 0
  %774 = vmatpush1.bf16.msra.mxu0 0
  %775 = vmatprep.subr.bf16.mxu0 0
  %776 = vmatpush1.bf16.msra.mxu0 0
  %777 = vmatprep.subr.bf16.mxu0 0
  %778 = vmatpush1.bf16.msra.mxu0 0
  %779 = vmatprep.mubr.bf16.mxu0 0
  %780 = vmatmul.mubr.bf16.gmra.mrb[0].mxu0 %v652
  %v781 = vpop.f32.mrb[0].mxu0
  %v782 = vadd.f32 %v637, %v781
  %v783 = vpop.f32.mrb[0].mxu0
  %v784 = vpop.f32.mrb[0].mxu0
  %v785 = vadd.f32 %v637, %v784
  %v786 = vpop.f32.mrb[0].mxu0
  %787 = vmatprep.mubr.bf16.mxu0 0
  %788 = vmatmul.mubr.bf16.gmra.mrb[0].mxu0 %v655
  %v789 = vpop.f32.mrb[0].mxu0
  %v790 = vadd.f32 %v637, %v789
  %v791 = vpop.f32.mrb[0].mxu0
  %v792 = vpop.f32.mrb[0].mxu0
  %v793 = vadd.f32 %v637, %v792
  %v794 = vpop.f32.mrb[0].mxu0
  %795 = vmatprep.mubr.bf16.mxu0 0
  %796 = vmatmul.mubr.bf16.gmra.mrb[0].mxu0 %v658
  %v797 = vpop.f32.mrb[0].mxu0
  %v798 = vadd.f32 %v637, %v797
  %v799 = vpop.f32.mrb[0].mxu0
  %v800 = vpop.f32.mrb[0].mxu0
  %v801 = vadd.f32 %v637, %v800
  %v802 = vpop.f32.mrb[0].mxu0
  %803 = vmatprep.mubr.bf16.mxu0 0
  %804 = vmatmul.mubr.bf16.gmra.mrb[0].mxu0 %v661
  %v805 = vpop.f32.mrb[0].mxu0
  %v806 = vadd.f32 %v637, %v805
  %v807 = vpop.f32.mrb[0].mxu0
  %v808 = vpop.f32.mrb[0].mxu0
  %v809 = vadd.f32 %v637, %v808
  %v810 = vpop.f32.mrb[0].mxu0
  %811 = vmatprep.mubr.bf16.mxu0 0
  %812 = vmatmul.mubr.bf16.gmra.mrb[0].mxu0 %v664
  %v813 = vpop.f32.mrb[0].mxu0
  %v814 = vadd.f32 %v637, %v813
  %v815 = vpop.f32.mrb[0].mxu0
  %v816 = vpop.f32.mrb[0].mxu0
  %v817 = vadd.f32 %v637, %v816
  %v818 = vpop.f32.mrb[0].mxu0
  %819 = vmatprep.mubr.bf16.mxu0 0
  %820 = vmatmul.mubr.bf16.gmra.mrb[0].mxu0 %v667
  %v821 = vpop.f32.mrb[0].mxu0
  %v822 = vadd.f32 %v637, %v821
  %v823 = vpop.f32.mrb[0].mxu0
  %v824 = vpop.f32.mrb[0].mxu0
  %v825 = vadd.f32 %v637, %v824
  %v826 = vpop.f32.mrb[0].mxu0
  %827 = vmatprep.mubr.bf16.mxu0 0
  %828 = vmatmul.mubr.bf16.gmra.mrb[0].mxu0 %v670
  %v829 = vpop.f32.mrb[0].mxu0
  %v830 = vadd.f32 %v637, %v829
  %v831 = vpop.f32.mrb[0].mxu0
  %v832 = vpop.f32.mrb[0].mxu0
  %v833 = vadd.f32 %v637, %v832
  %v834 = vpop.f32.mrb[0].mxu0
  %835 = vmatprep.mubr.bf16.mxu0 0
  %836 = vmatmul.mubr.bf16.gmra.mrb[0].mxu0 %v673
  %v837 = vpop.f32.mrb[0].mxu0
  %v838 = vadd.f32 %v637, %v837
  %v839 = vpop.f32.mrb[0].mxu0
  %v840 = vpop.f32.mrb[0].mxu0
  %v841 = vadd.f32 %v637, %v840
  %v842 = vpop.f32.mrb[0].mxu0
  %843 = vmatprep.mubr.bf16.mxu0 0
  %844 = vmatmul.mubr.bf16.gmra.mrb[0].mxu0 %v676
  %v845 = vpop.f32.mrb[0].mxu0
  %v846 = vadd.f32 %v637, %v845
  %v847 = vpop.f32.mrb[0].mxu0
  %v848 = vpop.f32.mrb[0].mxu0
  %v849 = vadd.f32 %v637, %v848
  %v850 = vpop.f32.mrb[0].mxu0
  %851 = vmatprep.mubr.bf16.mxu0 0
  %852 = vmatmul.mubr.bf16.gmra.mrb[0].mxu0 %v679
  %v853 = vpop.f32.mrb[0].mxu0
  %v854 = vadd.f32 %v637, %v853
  %v855 = vpop.f32.mrb[0].mxu0
  %v856 = vpop.f32.mrb[0].mxu0
  %v857 = vadd.f32 %v637, %v856
  %v858 = vpop.f32.mrb[0].mxu0
  %859 = vmatprep.mubr.bf16.mxu0 0
  %860 = vmatmul.mubr.bf16.gmra.mrb[0].mxu0 %v682
  %v861 = vpop.f32.mrb[0].mxu0
  %v862 = vadd.f32 %v637, %v861
  %v863 = vpop.f32.mrb[0].mxu0
  %v864 = vpop.f32.mrb[0].mxu0
  %v865 = vadd.f32 %v637, %v864
  %v866 = vpop.f32.mrb[0].mxu0
  %867 = vmatprep.mubr.bf16.mxu0 0
  %868 = vmatmul.mubr.bf16.gmra.mrb[0].mxu0 %v685
  %v869 = vpop.f32.mrb[0].mxu0
  %v870 = vadd.f32 %v637, %v869
  %v871 = vpop.f32.mrb[0].mxu0
  %v872 = vpop.f32.mrb[0].mxu0
  %v873 = vadd.f32 %v637, %v872
  %v874 = vpop.f32.mrb[0].mxu0
  %875 = vmatprep.mubr.bf16.mxu0 0
  %876 = vmatmul.mubr.bf16.gmra.mrb[0].mxu0 %v688
  %v877 = vpop.f32.mrb[0].mxu0
  %v878 = vadd.f32 %v637, %v877
  %v879 = vpop.f32.mrb[0].mxu0
  %v880 = vpop.f32.mrb[0].mxu0
  %v881 = vadd.f32 %v637, %v880
  %v882 = vpop.f32.mrb[0].mxu0
  %883 = vmatprep.mubr.bf16.mxu0 0
  %884 = vmatmul.mubr.bf16.gmra.mrb[0].mxu0 %v691
  %v885 = vpop.f32.mrb[0].mxu0
  %v886 = vadd.f32 %v637, %v885
  %v887 = vpop.f32.mrb[0].mxu0
  %v888 = vpop.f32.mrb[0].mxu0
  %v889 = vadd.f32 %v637, %v888
  %v890 = vpop.f32.mrb[0].mxu0
  %891 = vmatprep.mubr.bf16.mxu0 0
  %892 = vmatmul.mubr.bf16.gmra.mrb[0].mxu0 %v694
  %v893 = vpop.f32.mrb[0].mxu0
  %v894 = vadd.f32 %v637, %v893
  %v895 = vpop.f32.mrb[0].mxu0
  %v896 = vpop.f32.mrb[0].mxu0
  %v897 = vadd.f32 %v637, %v896
  %v898 = vpop.f32.mrb[0].mxu0
  %899 = vmatprep.mubr.bf16.mxu0 0
  %900 = vmatmul.mubr.bf16.gmra.mrb[0].mxu0 %v697
  %v901 = vpop.f32.mrb[0].mxu0
  %v902 = vadd.f32 %v637, %v901
  %v903 = vpop.f32.mrb[0].mxu0
  %v904 = vpop.f32.mrb[0].mxu0
  %v905 = vadd.f32 %v637, %v904
  %v906 = vpop.f32.mrb[0].mxu0
  %907 = vmatprep.mubr.bf16.mxu0 0
  %908 = vmatmul.mubr.bf16.gmra.mrb[0].mxu0 %v700
  %v909 = vpop.f32.mrb[0].mxu0
  %v910 = vadd.f32 %v637, %v909
  %v911 = vpop.f32.mrb[0].mxu0
  %v912 = vpop.f32.mrb[0].mxu0
  %v913 = vadd.f32 %v637, %v912
  %v914 = vpop.f32.mrb[0].mxu0
  %915 = vmatprep.mubr.bf16.mxu0 0
  %916 = vmatmul.mubr.bf16.gmra.mrb[0].mxu0 %v703
  %v917 = vpop.f32.mrb[0].mxu0
  %v918 = vadd.f32 %v637, %v917
  %v919 = vpop.f32.mrb[0].mxu0
  %v920 = vpop.f32.mrb[0].mxu0
  %v921 = vadd.f32 %v637, %v920
  %v922 = vpop.f32.mrb[0].mxu0
  %923 = vmatprep.mubr.bf16.mxu0 0
  %924 = vmatmul.mubr.bf16.gmra.mrb[0].mxu0 %v706
  %v925 = vpop.f32.mrb[0].mxu0
  %v926 = vadd.f32 %v637, %v925
  %v927 = vpop.f32.mrb[0].mxu0
  %v928 = vpop.f32.mrb[0].mxu0
  %v929 = vadd.f32 %v637, %v928
  %v930 = vpop.f32.mrb[0].mxu0
  %931 = vmatprep.mubr.bf16.mxu0 0
  %932 = vmatmul.mubr.bf16.gmra.mrb[0].mxu0 %v709
  %v933 = vpop.f32.mrb[0].mxu0
  %v934 = vadd.f32 %v637, %v933
  %v935 = vpop.f32.mrb[0].mxu0
  %v936 = vpop.f32.mrb[0].mxu0
  %v937 = vadd.f32 %v637, %v936
  %v938 = vpop.f32.mrb[0].mxu0
  %939 = vmatprep.mubr.bf16.mxu0 0
  %940 = vmatmul.mubr.bf16.gmra.mrb[0].mxu0 %v712
  %v941 = vpop.f32.mrb[0].mxu0
  %v942 = vadd.f32 %v637, %v941
  %v943 = vpop.f32.mrb[0].mxu0
  %v944 = vpop.f32.mrb[0].mxu0
  %v945 = vadd.f32 %v637, %v944
  %v946 = vpop.f32.mrb[0].mxu0
  %947 = vmatprep.mubr.bf16.mxu0 0
  %948 = vmatmul.mubr.bf16.gmra.mrb[0].mxu0 %v715
  %v949 = vpop.f32.mrb[0].mxu0
  %v950 = vadd.f32 %v637, %v949
  %v951 = vpop.f32.mrb[0].mxu0
  %v952 = vpop.f32.mrb[0].mxu0
  %v953 = vadd.f32 %v637, %v952
  %v954 = vpop.f32.mrb[0].mxu0
  %955 = vmatprep.mubr.bf16.mxu0 0
  %956 = vmatmul.mubr.bf16.gmra.mrb[0].mxu0 %v718
  %v957 = vpop.f32.mrb[0].mxu0
  %v958 = vadd.f32 %v637, %v957
  %v959 = vpop.f32.mrb[0].mxu0
  %v960 = vpop.f32.mrb[0].mxu0
  %v961 = vadd.f32 %v637, %v960
  %v962 = vpop.f32.mrb[0].mxu0
  %963 = vmatprep.mubr.bf16.mxu0 0
  %964 = vmatmul.mubr.bf16.gmra.mrb[0].mxu0 %v721
  %v965 = vpop.f32.mrb[0].mxu0
  %v966 = vadd.f32 %v637, %v965
  %v967 = vpop.f32.mrb[0].mxu0
  %v968 = vpop.f32.mrb[0].mxu0
  %v969 = vadd.f32 %v637, %v968
  %v970 = vpop.f32.mrb[0].mxu0
  %971 = vmatprep.mubr.bf16.mxu0 0
  %972 = vmatmul.mubr.bf16.gmra.mrb[0].mxu0 %v724
  %v973 = vpop.f32.mrb[0].mxu0
  %v974 = vadd.f32 %v637, %v973
  %v975 = vpop.f32.mrb[0].mxu0
  %v976 = vpop.f32.mrb[0].mxu0
  %v977 = vadd.f32 %v637, %v976
  %v978 = vpop.f32.mrb[0].mxu0
  %979 = vmatprep.mubr.bf16.mxu0 0
  %980 = vmatmul.mubr.bf16.gmra.mrb[0].mxu0 %v727
  %v981 = vpop.f32.mrb[0].mxu0
  %v982 = vadd.f32 %v637, %v981
  %v983 = vpop.f32.mrb[0].mxu0
  %v984 = vpop.f32.mrb[0].mxu0
  %v985 = vadd.f32 %v637, %v984
  %v986 = vpop.f32.mrb[0].mxu0
  %987 = vmatprep.mubr.bf16.mxu0 0
  %988 = vmatmul.mubr.bf16.gmra.mrb[0].mxu0 %v730
  %v989 = vpop.f32.mrb[0].mxu0
  %v990 = vadd.f32 %v637, %v989
  %v991 = vpop.f32.mrb[0].mxu0
  %v992 = vpop.f32.mrb[0].mxu0
  %v993 = vadd.f32 %v637, %v992
  %v994 = vpop.f32.mrb[0].mxu0
  %995 = vmatprep.mubr.bf16.mxu0 0
  %996 = vmatmul.mubr.bf16.gmra.mrb[0].mxu0 %v733
  %v997 = vpop.f32.mrb[0].mxu0
  %v998 = vadd.f32 %v637, %v997
  %v999 = vpop.f32.mrb[0].mxu0
  %v1000 = vpop.f32.mrb[0].mxu0
  %v1001 = vadd.f32 %v637, %v1000
  %v1002 = vpop.f32.mrb[0].mxu0
  %1003 = vmatprep.mubr.bf16.mxu0 0
  %1004 = vmatmul.mubr.bf16.gmra.mrb[0].mxu0 %v736
  %v1005 = vpop.f32.mrb[0].mxu0
  %v1006 = vadd.f32 %v637, %v1005
  %v1007 = vpop.f32.mrb[0].mxu0
  %v1008 = vpop.f32.mrb[0].mxu0
  %v1009 = vadd.f32 %v637, %v1008
  %v1010 = vpop.f32.mrb[0].mxu0
  %1011 = vmatprep.mubr.bf16.mxu0 0
  %1012 = vmatmul.mubr.bf16.gmra.mrb[0].mxu0 %v739
  %v1013 = vpop.f32.mrb[0].mxu0
  %v1014 = vadd.f32 %v637, %v1013
  %v1015 = vpop.f32.mrb[0].mxu0
  %v1016 = vpop.f32.mrb[0].mxu0
  %v1017 = vadd.f32 %v637, %v1016
  %v1018 = vpop.f32.mrb[0].mxu0
  %1019 = vmatprep.mubr.bf16.mxu0 0
  %1020 = vmatmul.mubr.bf16.gmra.mrb[0].mxu0 %v742
  %v1021 = vpop.f32.mrb[0].mxu0
  %v1022 = vadd.f32 %v637, %v1021
  %v1023 = vpop.f32.mrb[0].mxu0
  %v1024 = vpop.f32.mrb[0].mxu0
  %v1025 = vadd.f32 %v637, %v1024
  %v1026 = vpop.f32.mrb[0].mxu0
  %1027 = vmatprep.mubr.bf16.mxu0 0
  %1028 = vmatmul.mubr.bf16.gmra.mrb[0].mxu0 %v745
  %v1029 = vpop.f32.mrb[0].mxu0
  %v1030 = vadd.f32 %v637, %v1029
  %v1031 = vpop.f32.mrb[0].mxu0
  %v1032 = vpop.f32.mrb[0].mxu0
  %v1033 = vadd.f32 %v637, %v1032
  %v1034 = vpop.f32.mrb[0].mxu0
  %1035 = vdwg.mxu0
  %v1036 = vmax.f32 %v782, 0.0
  %v1037 = vmax.f32 %v785, 0.0
  %v1038 = vmax.f32 %v790, 0.0
  %v1039 = vmax.f32 %v793, 0.0
  %v1040 = vmax.f32 %v798, 0.0
  %v1041 = vmax.f32 %v801, 0.0
  %v1042 = vmax.f32 %v806, 0.0
  %v1043 = vmax.f32 %v809, 0.0
  %v1044 = vmax.f32 %v814, 0.0
  %v1045 = vmax.f32 %v817, 0.0
  %v1046 = vmax.f32 %v822, 0.0
  %v1047 = vmax.f32 %v825, 0.0
  %v1048 = vmax.f32 %v830, 0.0
  %v1049 = vmax.f32 %v833, 0.0
  %v1050 = vmax.f32 %v838, 0.0
  %v1051 = vmax.f32 %v841, 0.0
  %v1052 = vmax.f32 %v846, 0.0
  %v1053 = vmax.f32 %v849, 0.0
  %v1054 = vmax.f32 %v854, 0.0
  %v1055 = vmax.f32 %v857, 0.0
  %v1056 = vmax.f32 %v862, 0.0
  %v1057 = vmax.f32 %v865, 0.0
  %v1058 = vmax.f32 %v870, 0.0
  %v1059 = vmax.f32 %v873, 0.0
  %v1060 = vmax.f32 %v878, 0.0
  %v1061 = vmax.f32 %v881, 0.0
  %v1062 = vmax.f32 %v886, 0.0
  %v1063 = vmax.f32 %v889, 0.0
  %v1064 = vmax.f32 %v894, 0.0
  %v1065 = vmax.f32 %v897, 0.0
  %v1066 = vmax.f32 %v902, 0.0
  %v1067 = vmax.f32 %v905, 0.0
  %v1068 = vmax.f32 %v910, 0.0
  %v1069 = vmax.f32 %v913, 0.0
  %v1070 = vmax.f32 %v918, 0.0
  %v1071 = vmax.f32 %v921, 0.0
  %v1072 = vmax.f32 %v926, 0.0
  %v1073 = vmax.f32 %v929, 0.0
  %v1074 = vmax.f32 %v934, 0.0
  %v1075 = vmax.f32 %v937, 0.0
  %v1076 = vmax.f32 %v942, 0.0
  %v1077 = vmax.f32 %v945, 0.0
  %v1078 = vmax.f32 %v950, 0.0
  %v1079 = vmax.f32 %v953, 0.0
  %v1080 = vmax.f32 %v958, 0.0
  %v1081 = vmax.f32 %v961, 0.0
  %v1082 = vmax.f32 %v966, 0.0
  %v1083 = vmax.f32 %v969, 0.0
  %v1084 = vmax.f32 %v974, 0.0
  %v1085 = vmax.f32 %v977, 0.0
  %v1086 = vmax.f32 %v982, 0.0
  %v1087 = vmax.f32 %v985, 0.0
  %v1088 = vmax.f32 %v990, 0.0
  %v1089 = vmax.f32 %v993, 0.0
  %v1090 = vmax.f32 %v998, 0.0
  %v1091 = vmax.f32 %v1001, 0.0
  %v1092 = vmax.f32 %v1006, 0.0
  %v1093 = vmax.f32 %v1009, 0.0
  %v1094 = vmax.f32 %v1014, 0.0
  %v1095 = vmax.f32 %v1017, 0.0
  %v1096 = vmax.f32 %v1022, 0.0
  %v1097 = vmax.f32 %v1025, 0.0
  %v1098 = vmax.f32 %v1030, 0.0
  %v1099 = vmax.f32 %v1033, 0.0
  %v1100 = vpack.c.bf16 %v1037, %v1036
  %v1101 = vpack.c.bf16 %v1039, %v1038
  %v1102 = vpack.c.bf16 %v1041, %v1040
  %v1103 = vpack.c.bf16 %v1043, %v1042
  %v1104 = vpack.c.bf16 %v1045, %v1044
  %v1105 = vpack.c.bf16 %v1047, %v1046
  %v1106 = vpack.c.bf16 %v1049, %v1048
  %v1107 = vpack.c.bf16 %v1051, %v1050
  %v1108 = vpack.c.bf16 %v1053, %v1052
  %v1109 = vpack.c.bf16 %v1055, %v1054
  %v1110 = vpack.c.bf16 %v1057, %v1056
  %v1111 = vpack.c.bf16 %v1059, %v1058
  %v1112 = vpack.c.bf16 %v1061, %v1060
  %v1113 = vpack.c.bf16 %v1063, %v1062
  %v1114 = vpack.c.bf16 %v1065, %v1064
  %v1115 = vpack.c.bf16 %v1067, %v1066
  %v1116 = vpack.c.bf16 %v1069, %v1068
  %v1117 = vpack.c.bf16 %v1071, %v1070
  %v1118 = vpack.c.bf16 %v1073, %v1072
  %v1119 = vpack.c.bf16 %v1075, %v1074
  %v1120 = vpack.c.bf16 %v1077, %v1076
  %v1121 = vpack.c.bf16 %v1079, %v1078
  %v1122 = vpack.c.bf16 %v1081, %v1080
  %v1123 = vpack.c.bf16 %v1083, %v1082
  %v1124 = vpack.c.bf16 %v1085, %v1084
  %v1125 = vpack.c.bf16 %v1087, %v1086
  %v1126 = vpack.c.bf16 %v1089, %v1088
  %v1127 = vpack.c.bf16 %v1091, %v1090
  %v1128 = vpack.c.bf16 %v1093, %v1092
  %v1129 = vpack.c.bf16 %v1095, %v1094
  %v1130 = vpack.c.bf16 %v1097, %v1096
  %v1131 = vpack.c.bf16 %v1099, %v1098
  %v1132 = vld [vmem:[%s5] sm:$0xf]
  %v1133 = vld [vmem:[%s5 + $0x4] sm:$0xf]
  %v1134 = vld [vmem:[%s5 + $0x8] sm:$0xf]
  %v1135 = vld [vmem:[%s5 + $0xc] sm:$0xf]
  %v1136 = vld [vmem:[%s6] sm:$0x1]
  %v1138 = vlaneseq
  %v1139 = vshrl.u32 %v1138, 7
  %v1140 = vsub.s32 0, %v1139
  %v1141 = vrot.slane %v1136, %v1140
  %v1147 = vunpack.c.l.b16 %v1132
  %v1148 = vunpack.c.l.b16 %v1133
  %v1149 = vunpack.c.l.b16 %v1134
  %v1150 = vunpack.c.l.b16 %v1135
  %v1151 = vpack.c.b16 %v1148, %v1147
  %v1152 = vpack.c.b16 %v1150, %v1149
  %v1156 = vsel %vm146, %v1100, 0
  %v1159 = vsel %vm146, %v1101, 0
  %v1162 = vsel %vm146, %v1102, 0
  %v1165 = vsel %vm146, %v1103, 0
  %v1168 = vsel %vm146, %v1104, 0
  %v1171 = vsel %vm146, %v1105, 0
  %v1174 = vsel %vm146, %v1106, 0
  %v1177 = vsel %vm146, %v1107, 0
  %v1180 = vsel %vm146, %v1108, 0
  %v1183 = vsel %vm146, %v1109, 0
  %v1186 = vsel %vm146, %v1110, 0
  %v1189 = vsel %vm146, %v1111, 0
  %v1192 = vsel %vm146, %v1112, 0
  %v1195 = vsel %vm146, %v1113, 0
  %v1198 = vsel %vm146, %v1114, 0
  %v1201 = vsel %vm146, %v1115, 0
  %v1204 = vsel %vm146, %v1116, 0
  %v1207 = vsel %vm146, %v1117, 0
  %v1210 = vsel %vm146, %v1118, 0
  %v1213 = vsel %vm146, %v1119, 0
  %v1216 = vsel %vm146, %v1120, 0
  %v1219 = vsel %vm146, %v1121, 0
  %v1222 = vsel %vm146, %v1122, 0
  %v1225 = vsel %vm146, %v1123, 0
  %v1228 = vsel %vm146, %v1124, 0
  %v1231 = vsel %vm146, %v1125, 0
  %v1234 = vsel %vm146, %v1126, 0
  %v1237 = vsel %vm146, %v1127, 0
  %v1240 = vsel %vm146, %v1128, 0
  %v1243 = vsel %vm146, %v1129, 0
  %v1246 = vsel %vm146, %v1130, 0
  %v1249 = vsel %vm146, %v1131, 0
  %1251 = vmatprep.subr.bf16.mxu0 0
  %1252 = vmatpush1.bf16.msra.mxu0 %v1151
  %1253 = vmatprep.subr.bf16.mxu0 0
  %1254 = vmatpush1.bf16.msra.mxu0 %v1152
  %1255 = vmatprep.subr.bf16.mxu0 0
  %1256 = vmatpush1.bf16.msra.mxu0 0
  %1257 = vmatprep.subr.bf16.mxu0 0
  %1258 = vmatpush1.bf16.msra.mxu0 0
  %1259 = vmatprep.subr.bf16.mxu0 0
  %1260 = vmatpush1.bf16.msra.mxu0 0
  %1261 = vmatprep.subr.bf16.mxu0 0
  %1262 = vmatpush1.bf16.msra.mxu0 0
  %1263 = vmatprep.subr.bf16.mxu0 0
  %1264 = vmatpush1.bf16.msra.mxu0 0
  %1265 = vmatprep.subr.bf16.mxu0 0
  %1266 = vmatpush1.bf16.msra.mxu0 0
  %1267 = vmatprep.subr.bf16.mxu0 0
  %1268 = vmatpush1.bf16.msra.mxu0 0
  %1269 = vmatprep.subr.bf16.mxu0 0
  %1270 = vmatpush1.bf16.msra.mxu0 0
  %1271 = vmatprep.subr.bf16.mxu0 0
  %1272 = vmatpush1.bf16.msra.mxu0 0
  %1273 = vmatprep.subr.bf16.mxu0 0
  %1274 = vmatpush1.bf16.msra.mxu0 0
  %1275 = vmatprep.subr.bf16.mxu0 0
  %1276 = vmatpush1.bf16.msra.mxu0 0
  %1277 = vmatprep.subr.bf16.mxu0 0
  %1278 = vmatpush1.bf16.msra.mxu0 0
  %1279 = vmatprep.subr.bf16.mxu0 0
  %1280 = vmatpush1.bf16.msra.mxu0 0
  %1281 = vmatprep.subr.bf16.mxu0 0
  %1282 = vmatpush1.bf16.msra.mxu0 0
  %1283 = vmatprep.mubr.bf16.mxu0 0
  %1284 = vmatmul.mubr.bf16.gmra.mrb[0].mxu0 %v1156
  %v1285 = vpop.f32.mrb[0].mxu0
  %v1286 = vadd.f32 %v1141, %v1285
  %v1287 = vpop.f32.mrb[0].mxu0
  %v1288 = vpop.f32.mrb[0].mxu0
  %v1289 = vadd.f32 %v1141, %v1288
  %v1290 = vpop.f32.mrb[0].mxu0
  %1291 = vmatprep.mubr.bf16.mxu0 0
  %1292 = vmatmul.mubr.bf16.gmra.mrb[0].mxu0 %v1159
  %v1293 = vpop.f32.mrb[0].mxu0
  %v1294 = vadd.f32 %v1141, %v1293
  %v1295 = vpop.f32.mrb[0].mxu0
  %v1296 = vpop.f32.mrb[0].mxu0
  %v1297 = vadd.f32 %v1141, %v1296
  %v1298 = vpop.f32.mrb[0].mxu0
  %1299 = vmatprep.mubr.bf16.mxu0 0
  %1300 = vmatmul.mubr.bf16.gmra.mrb[0].mxu0 %v1162
  %v1301 = vpop.f32.mrb[0].mxu0
  %v1302 = vadd.f32 %v1141, %v1301
  %v1303 = vpop.f32.mrb[0].mxu0
  %v1304 = vpop.f32.mrb[0].mxu0
  %v1305 = vadd.f32 %v1141, %v1304
  %v1306 = vpop.f32.mrb[0].mxu0
  %1307 = vmatprep.mubr.bf16.mxu0 0
  %1308 = vmatmul.mubr.bf16.gmra.mrb[0].mxu0 %v1165
  %v1309 = vpop.f32.mrb[0].mxu0
  %v1310 = vadd.f32 %v1141, %v1309
  %v1311 = vpop.f32.mrb[0].mxu0
  %v1312 = vpop.f32.mrb[0].mxu0
  %v1313 = vadd.f32 %v1141, %v1312
  %v1314 = vpop.f32.mrb[0].mxu0
  %1315 = vmatprep.mubr.bf16.mxu0 0
  %1316 = vmatmul.mubr.bf16.gmra.mrb[0].mxu0 %v1168
  %v1317 = vpop.f32.mrb[0].mxu0
  %v1318 = vadd.f32 %v1141, %v1317
  %v1319 = vpop.f32.mrb[0].mxu0
  %v1320 = vpop.f32.mrb[0].mxu0
  %v1321 = vadd.f32 %v1141, %v1320
  %v1322 = vpop.f32.mrb[0].mxu0
  %1323 = vmatprep.mubr.bf16.mxu0 0
  %1324 = vmatmul.mubr.bf16.gmra.mrb[0].mxu0 %v1171
  %v1325 = vpop.f32.mrb[0].mxu0
  %v1326 = vadd.f32 %v1141, %v1325
  %v1327 = vpop.f32.mrb[0].mxu0
  %v1328 = vpop.f32.mrb[0].mxu0
  %v1329 = vadd.f32 %v1141, %v1328
  %v1330 = vpop.f32.mrb[0].mxu0
  %1331 = vmatprep.mubr.bf16.mxu0 0
  %1332 = vmatmul.mubr.bf16.gmra.mrb[0].mxu0 %v1174
  %v1333 = vpop.f32.mrb[0].mxu0
  %v1334 = vadd.f32 %v1141, %v1333
  %v1335 = vpop.f32.mrb[0].mxu0
  %v1336 = vpop.f32.mrb[0].mxu0
  %v1337 = vadd.f32 %v1141, %v1336
  %v1338 = vpop.f32.mrb[0].mxu0
  %1339 = vmatprep.mubr.bf16.mxu0 0
  %1340 = vmatmul.mubr.bf16.gmra.mrb[0].mxu0 %v1177
  %v1341 = vpop.f32.mrb[0].mxu0
  %v1342 = vadd.f32 %v1141, %v1341
  %v1343 = vpop.f32.mrb[0].mxu0
  %v1344 = vpop.f32.mrb[0].mxu0
  %v1345 = vadd.f32 %v1141, %v1344
  %v1346 = vpop.f32.mrb[0].mxu0
  %1347 = vmatprep.mubr.bf16.mxu0 0
  %1348 = vmatmul.mubr.bf16.gmra.mrb[0].mxu0 %v1180
  %v1349 = vpop.f32.mrb[0].mxu0
  %v1350 = vadd.f32 %v1141, %v1349
  %v1351 = vpop.f32.mrb[0].mxu0
  %v1352 = vpop.f32.mrb[0].mxu0
  %v1353 = vadd.f32 %v1141, %v1352
  %v1354 = vpop.f32.mrb[0].mxu0
  %1355 = vmatprep.mubr.bf16.mxu0 0
  %1356 = vmatmul.mubr.bf16.gmra.mrb[0].mxu0 %v1183
  %v1357 = vpop.f32.mrb[0].mxu0
  %v1358 = vadd.f32 %v1141, %v1357
  %v1359 = vpop.f32.mrb[0].mxu0
  %v1360 = vpop.f32.mrb[0].mxu0
  %v1361 = vadd.f32 %v1141, %v1360
  %v1362 = vpop.f32.mrb[0].mxu0
  %1363 = vmatprep.mubr.bf16.mxu0 0
  %1364 = vmatmul.mubr.bf16.gmra.mrb[0].mxu0 %v1186
  %v1365 = vpop.f32.mrb[0].mxu0
  %v1366 = vadd.f32 %v1141, %v1365
  %v1367 = vpop.f32.mrb[0].mxu0
  %v1368 = vpop.f32.mrb[0].mxu0
  %v1369 = vadd.f32 %v1141, %v1368
  %v1370 = vpop.f32.mrb[0].mxu0
  %1371 = vmatprep.mubr.bf16.mxu0 0
  %1372 = vmatmul.mubr.bf16.gmra.mrb[0].mxu0 %v1189
  %v1373 = vpop.f32.mrb[0].mxu0
  %v1374 = vadd.f32 %v1141, %v1373
  %v1375 = vpop.f32.mrb[0].mxu0
  %v1376 = vpop.f32.mrb[0].mxu0
  %v1377 = vadd.f32 %v1141, %v1376
  %v1378 = vpop.f32.mrb[0].mxu0
  %1379 = vmatprep.mubr.bf16.mxu0 0
  %1380 = vmatmul.mubr.bf16.gmra.mrb[0].mxu0 %v1192
  %v1381 = vpop.f32.mrb[0].mxu0
  %v1382 = vadd.f32 %v1141, %v1381
  %v1383 = vpop.f32.mrb[0].mxu0
  %v1384 = vpop.f32.mrb[0].mxu0
  %v1385 = vadd.f32 %v1141, %v1384
  %v1386 = vpop.f32.mrb[0].mxu0
  %1387 = vmatprep.mubr.bf16.mxu0 0
  %1388 = vmatmul.mubr.bf16.gmra.mrb[0].mxu0 %v1195
  %v1389 = vpop.f32.mrb[0].mxu0
  %v1390 = vadd.f32 %v1141, %v1389
  %v1391 = vpop.f32.mrb[0].mxu0
  %v1392 = vpop.f32.mrb[0].mxu0
  %v1393 = vadd.f32 %v1141, %v1392
  %v1394 = vpop.f32.mrb[0].mxu0
  %1395 = vmatprep.mubr.bf16.mxu0 0
  %1396 = vmatmul.mubr.bf16.gmra.mrb[0].mxu0 %v1198
  %v1397 = vpop.f32.mrb[0].mxu0
  %v1398 = vadd.f32 %v1141, %v1397
  %v1399 = vpop.f32.mrb[0].mxu0
  %v1400 = vpop.f32.mrb[0].mxu0
  %v1401 = vadd.f32 %v1141, %v1400
  %v1402 = vpop.f32.mrb[0].mxu0
  %1403 = vmatprep.mubr.bf16.mxu0 0
  %1404 = vmatmul.mubr.bf16.gmra.mrb[0].mxu0 %v1201
  %v1405 = vpop.f32.mrb[0].mxu0
  %v1406 = vadd.f32 %v1141, %v1405
  %v1407 = vpop.f32.mrb[0].mxu0
  %v1408 = vpop.f32.mrb[0].mxu0
  %v1409 = vadd.f32 %v1141, %v1408
  %v1410 = vpop.f32.mrb[0].mxu0
  %1411 = vmatprep.mubr.bf16.mxu0 0
  %1412 = vmatmul.mubr.bf16.gmra.mrb[0].mxu0 %v1204
  %v1413 = vpop.f32.mrb[0].mxu0
  %v1414 = vadd.f32 %v1141, %v1413
  %v1415 = vpop.f32.mrb[0].mxu0
  %v1416 = vpop.f32.mrb[0].mxu0
  %v1417 = vadd.f32 %v1141, %v1416
  %v1418 = vpop.f32.mrb[0].mxu0
  %1419 = vmatprep.mubr.bf16.mxu0 0
  %1420 = vmatmul.mubr.bf16.gmra.mrb[0].mxu0 %v1207
  %v1421 = vpop.f32.mrb[0].mxu0
  %v1422 = vadd.f32 %v1141, %v1421
  %v1423 = vpop.f32.mrb[0].mxu0
  %v1424 = vpop.f32.mrb[0].mxu0
  %v1425 = vadd.f32 %v1141, %v1424
  %v1426 = vpop.f32.mrb[0].mxu0
  %1427 = vmatprep.mubr.bf16.mxu0 0
  %1428 = vmatmul.mubr.bf16.gmra.mrb[0].mxu0 %v1210
  %v1429 = vpop.f32.mrb[0].mxu0
  %v1430 = vadd.f32 %v1141, %v1429
  %v1431 = vpop.f32.mrb[0].mxu0
  %v1432 = vpop.f32.mrb[0].mxu0
  %v1433 = vadd.f32 %v1141, %v1432
  %v1434 = vpop.f32.mrb[0].mxu0
  %1435 = vmatprep.mubr.bf16.mxu0 0
  %1436 = vmatmul.mubr.bf16.gmra.mrb[0].mxu0 %v1213
  %v1437 = vpop.f32.mrb[0].mxu0
  %v1438 = vadd.f32 %v1141, %v1437
  %v1439 = vpop.f32.mrb[0].mxu0
  %v1440 = vpop.f32.mrb[0].mxu0
  %v1441 = vadd.f32 %v1141, %v1440
  %v1442 = vpop.f32.mrb[0].mxu0
  %1443 = vmatprep.mubr.bf16.mxu0 0
  %1444 = vmatmul.mubr.bf16.gmra.mrb[0].mxu0 %v1216
  %v1445 = vpop.f32.mrb[0].mxu0
  %v1446 = vadd.f32 %v1141, %v1445
  %v1447 = vpop.f32.mrb[0].mxu0
  %v1448 = vpop.f32.mrb[0].mxu0
  %v1449 = vadd.f32 %v1141, %v1448
  %v1450 = vpop.f32.mrb[0].mxu0
  %1451 = vmatprep.mubr.bf16.mxu0 0
  %1452 = vmatmul.mubr.bf16.gmra.mrb[0].mxu0 %v1219
  %v1453 = vpop.f32.mrb[0].mxu0
  %v1454 = vadd.f32 %v1141, %v1453
  %v1455 = vpop.f32.mrb[0].mxu0
  %v1456 = vpop.f32.mrb[0].mxu0
  %v1457 = vadd.f32 %v1141, %v1456
  %v1458 = vpop.f32.mrb[0].mxu0
  %1459 = vmatprep.mubr.bf16.mxu0 0
  %1460 = vmatmul.mubr.bf16.gmra.mrb[0].mxu0 %v1222
  %v1461 = vpop.f32.mrb[0].mxu0
  %v1462 = vadd.f32 %v1141, %v1461
  %v1463 = vpop.f32.mrb[0].mxu0
  %v1464 = vpop.f32.mrb[0].mxu0
  %v1465 = vadd.f32 %v1141, %v1464
  %v1466 = vpop.f32.mrb[0].mxu0
  %1467 = vmatprep.mubr.bf16.mxu0 0
  %1468 = vmatmul.mubr.bf16.gmra.mrb[0].mxu0 %v1225
  %v1469 = vpop.f32.mrb[0].mxu0
  %v1470 = vadd.f32 %v1141, %v1469
  %v1471 = vpop.f32.mrb[0].mxu0
  %v1472 = vpop.f32.mrb[0].mxu0
  %v1473 = vadd.f32 %v1141, %v1472
  %v1474 = vpop.f32.mrb[0].mxu0
  %1475 = vmatprep.mubr.bf16.mxu0 0
  %1476 = vmatmul.mubr.bf16.gmra.mrb[0].mxu0 %v1228
  %v1477 = vpop.f32.mrb[0].mxu0
  %v1478 = vadd.f32 %v1141, %v1477
  %v1479 = vpop.f32.mrb[0].mxu0
  %v1480 = vpop.f32.mrb[0].mxu0
  %v1481 = vadd.f32 %v1141, %v1480
  %v1482 = vpop.f32.mrb[0].mxu0
  %1483 = vmatprep.mubr.bf16.mxu0 0
  %1484 = vmatmul.mubr.bf16.gmra.mrb[0].mxu0 %v1231
  %v1485 = vpop.f32.mrb[0].mxu0
  %v1486 = vadd.f32 %v1141, %v1485
  %v1487 = vpop.f32.mrb[0].mxu0
  %v1488 = vpop.f32.mrb[0].mxu0
  %v1489 = vadd.f32 %v1141, %v1488
  %v1490 = vpop.f32.mrb[0].mxu0
  %1491 = vmatprep.mubr.bf16.mxu0 0
  %1492 = vmatmul.mubr.bf16.gmra.mrb[0].mxu0 %v1234
  %v1493 = vpop.f32.mrb[0].mxu0
  %v1494 = vadd.f32 %v1141, %v1493
  %v1495 = vpop.f32.mrb[0].mxu0
  %v1496 = vpop.f32.mrb[0].mxu0
  %v1497 = vadd.f32 %v1141, %v1496
  %v1498 = vpop.f32.mrb[0].mxu0
  %1499 = vmatprep.mubr.bf16.mxu0 0
  %1500 = vmatmul.mubr.bf16.gmra.mrb[0].mxu0 %v1237
  %v1501 = vpop.f32.mrb[0].mxu0
  %v1502 = vadd.f32 %v1141, %v1501
  %v1503 = vpop.f32.mrb[0].mxu0
  %v1504 = vpop.f32.mrb[0].mxu0
  %v1505 = vadd.f32 %v1141, %v1504
  %v1506 = vpop.f32.mrb[0].mxu0
  %1507 = vmatprep.mubr.bf16.mxu0 0
  %1508 = vmatmul.mubr.bf16.gmra.mrb[0].mxu0 %v1240
  %v1509 = vpop.f32.mrb[0].mxu0
  %v1510 = vadd.f32 %v1141, %v1509
  %v1511 = vpop.f32.mrb[0].mxu0
  %v1512 = vpop.f32.mrb[0].mxu0
  %v1513 = vadd.f32 %v1141, %v1512
  %v1514 = vpop.f32.mrb[0].mxu0
  %1515 = vmatprep.mubr.bf16.mxu0 0
  %1516 = vmatmul.mubr.bf16.gmra.mrb[0].mxu0 %v1243
  %v1517 = vpop.f32.mrb[0].mxu0
  %v1518 = vadd.f32 %v1141, %v1517
  %v1519 = vpop.f32.mrb[0].mxu0
  %v1520 = vpop.f32.mrb[0].mxu0
  %v1521 = vadd.f32 %v1141, %v1520
  %v1522 = vpop.f32.mrb[0].mxu0
  %1523 = vmatprep.mubr.bf16.mxu0 0
  %1524 = vmatmul.mubr.bf16.gmra.mrb[0].mxu0 %v1246
  %v1525 = vpop.f32.mrb[0].mxu0
  %v1526 = vadd.f32 %v1141, %v1525
  %v1527 = vpop.f32.mrb[0].mxu0
  %v1528 = vpop.f32.mrb[0].mxu0
  %v1529 = vadd.f32 %v1141, %v1528
  %v1530 = vpop.f32.mrb[0].mxu0
  %1531 = vmatprep.mubr.bf16.mxu0 0
  %1532 = vmatmul.mubr.bf16.gmra.mrb[0].mxu0 %v1249
  %v1533 = vpop.f32.mrb[0].mxu0
  %v1534 = vadd.f32 %v1141, %v1533
  %v1535 = vpop.f32.mrb[0].mxu0
  %v1536 = vpop.f32.mrb[0].mxu0
  %v1537 = vadd.f32 %v1141, %v1536
  %v1538 = vpop.f32.mrb[0].mxu0
  %1539 = vdwg.mxu0
  %vm1540 = vcmask 130048
  %1541 = vst.msk [vmem:[%s7] sm:$0xff] %vm1540, %v1286
  %1542 = vst.msk [vmem:[%s7 + $0x8] sm:$0xff] %vm1540, %v1289
  %1543 = vst.msk [vmem:[%s7 + $0x10] sm:$0xff] %vm1540, %v1294
  %1544 = vst.msk [vmem:[%s7 + $0x18] sm:$0xff] %vm1540, %v1297
  %1545 = vst.msk [vmem:[%s7 + $0x20] sm:$0xff] %vm1540, %v1302
  %1546 = vst.msk [vmem:[%s7 + $0x28] sm:$0xff] %vm1540, %v1305
  %1547 = vst.msk [vmem:[%s7 + $0x30] sm:$0xff] %vm1540, %v1310
  %1548 = vst.msk [vmem:[%s7 + $0x38] sm:$0xff] %vm1540, %v1313
  %1549 = vst.msk [vmem:[%s7 + $0x40] sm:$0xff] %vm1540, %v1318
  %1550 = vst.msk [vmem:[%s7 + $0x48] sm:$0xff] %vm1540, %v1321
  %1551 = vst.msk [vmem:[%s7 + $0x50] sm:$0xff] %vm1540, %v1326
  %1552 = vst.msk [vmem:[%s7 + $0x58] sm:$0xff] %vm1540, %v1329
  %1553 = vst.msk [vmem:[%s7 + $0x60] sm:$0xff] %vm1540, %v1334
  %1554 = vst.msk [vmem:[%s7 + $0x68] sm:$0xff] %vm1540, %v1337
  %1555 = vst.msk [vmem:[%s7 + $0x70] sm:$0xff] %vm1540, %v1342
  %1556 = vst.msk [vmem:[%s7 + $0x78] sm:$0xff] %vm1540, %v1345
  %1557 = vst.msk [vmem:[%s7 + $0x80] sm:$0xff] %vm1540, %v1350
  %1558 = vst.msk [vmem:[%s7 + $0x88] sm:$0xff] %vm1540, %v1353
  %1559 = vst.msk [vmem:[%s7 + $0x90] sm:$0xff] %vm1540, %v1358
  %1560 = vst.msk [vmem:[%s7 + $0x98] sm:$0xff] %vm1540, %v1361
  %1561 = vst.msk [vmem:[%s7 + $0xa0] sm:$0xff] %vm1540, %v1366
  %1562 = vst.msk [vmem:[%s7 + $0xa8] sm:$0xff] %vm1540, %v1369
  %1563 = vst.msk [vmem:[%s7 + $0xb0] sm:$0xff] %vm1540, %v1374
  %1564 = vst.msk [vmem:[%s7 + $0xb8] sm:$0xff] %vm1540, %v1377
  %1565 = vst.msk [vmem:[%s7 + $0xc0] sm:$0xff] %vm1540, %v1382
  %1566 = vst.msk [vmem:[%s7 + $0xc8] sm:$0xff] %vm1540, %v1385
  %1567 = vst.msk [vmem:[%s7 + $0xd0] sm:$0xff] %vm1540, %v1390
  %1568 = vst.msk [vmem:[%s7 + $0xd8] sm:$0xff] %vm1540, %v1393
  %1569 = vst.msk [vmem:[%s7 + $0xe0] sm:$0xff] %vm1540, %v1398
  %1570 = vst.msk [vmem:[%s7 + $0xe8] sm:$0xff] %vm1540, %v1401
  %1571 = vst.msk [vmem:[%s7 + $0xf0] sm:$0xff] %vm1540, %v1406
  %1572 = vst.msk [vmem:[%s7 + $0xf8] sm:$0xff] %vm1540, %v1409
  %1573 = vst.msk [vmem:[%s7 + $0x100] sm:$0xff] %vm1540, %v1414
  %1574 = vst.msk [vmem:[%s7 + $0x108] sm:$0xff] %vm1540, %v1417
  %1575 = vst.msk [vmem:[%s7 + $0x110] sm:$0xff] %vm1540, %v1422
  %1576 = vst.msk [vmem:[%s7 + $0x118] sm:$0xff] %vm1540, %v1425
  %1577 = vst.msk [vmem:[%s7 + $0x120] sm:$0xff] %vm1540, %v1430
  %1578 = vst.msk [vmem:[%s7 + $0x128] sm:$0xff] %vm1540, %v1433
  %1579 = vst.msk [vmem:[%s7 + $0x130] sm:$0xff] %vm1540, %v1438
  %1580 = vst.msk [vmem:[%s7 + $0x138] sm:$0xff] %vm1540, %v1441
  %1581 = vst.msk [vmem:[%s7 + $0x140] sm:$0xff] %vm1540, %v1446
  %1582 = vst.msk [vmem:[%s7 + $0x148] sm:$0xff] %vm1540, %v1449
  %1583 = vst.msk [vmem:[%s7 + $0x150] sm:$0xff] %vm1540, %v1454
  %1584 = vst.msk [vmem:[%s7 + $0x158] sm:$0xff] %vm1540, %v1457
  %1585 = vst.msk [vmem:[%s7 + $0x160] sm:$0xff] %vm1540, %v1462
  %1586 = vst.msk [vmem:[%s7 + $0x168] sm:$0xff] %vm1540, %v1465
  %1587 = vst.msk [vmem:[%s7 + $0x170] sm:$0xff] %vm1540, %v1470
  %1588 = vst.msk [vmem:[%s7 + $0x178] sm:$0xff] %vm1540, %v1473
  %1589 = vst.msk [vmem:[%s7 + $0x180] sm:$0xff] %vm1540, %v1478
  %1590 = vst.msk [vmem:[%s7 + $0x188] sm:$0xff] %vm1540, %v1481
  %1591 = vst.msk [vmem:[%s7 + $0x190] sm:$0xff] %vm1540, %v1486
  %1592 = vst.msk [vmem:[%s7 + $0x198] sm:$0xff] %vm1540, %v1489
  %1593 = vst.msk [vmem:[%s7 + $0x1a0] sm:$0xff] %vm1540, %v1494
  %1594 = vst.msk [vmem:[%s7 + $0x1a8] sm:$0xff] %vm1540, %v1497
  %1595 = vst.msk [vmem:[%s7 + $0x1b0] sm:$0xff] %vm1540, %v1502
  %1596 = vst.msk [vmem:[%s7 + $0x1b8] sm:$0xff] %vm1540, %v1505
  %1597 = vst.msk [vmem:[%s7 + $0x1c0] sm:$0xff] %vm1540, %v1510
  %1598 = vst.msk [vmem:[%s7 + $0x1c8] sm:$0xff] %vm1540, %v1513
  %1599 = vst.msk [vmem:[%s7 + $0x1d0] sm:$0xff] %vm1540, %v1518
  %1600 = vst.msk [vmem:[%s7 + $0x1d8] sm:$0xff] %vm1540, %v1521
  %1601 = vst.msk [vmem:[%s7 + $0x1e0] sm:$0xff] %vm1540, %v1526
  %1602 = vst.msk [vmem:[%s7 + $0x1e8] sm:$0xff] %vm1540, %v1529
  %1603 = vst.msk [vmem:[%s7 + $0x1f0] sm:$0xff] %vm1540, %v1534
  %1604 = vst.msk [vmem:[%s7 + $0x1f8] sm:$0xff] %vm1540, %v1537
  // Predicated region
  $region30: #{neural_net_forward.1} parent=0 // pred_check
    _
  $region31: #{neural_net_forward.1} parent=0 // pred_check_branch
    %1606 = sbr.rel (0) target = $region33
  $region32: #{neural_net_forward.1} parent=0 // pred_region
    _
  $region33: #{neural_net_forward.1} parent=0 // pred_fallthru
    _
  // Predicated region
  $region34: #{neural_net_forward.1} parent=0 // pred_check
    _
  $region35: #{neural_net_forward.1} parent=0 // pred_check_branch
    %1608 = sbr.rel (0) target = $region37
  $region36: #{neural_net_forward.1} parent=0 // pred_region
    _
  $region37: #{neural_net_forward.1} parent=0 // pred_fallthru
    _

</llo_original>
